<compile_context>
chip_gen: v6e
topology: v6e:2x2x1
jax: 0.10.0
libtpu: 0.0.40
codegen_flags: <defaults>
</compile_context>

<pallas_src>
import functools

import jax
import jax.numpy as jnp
from jax.experimental import pallas as pl
from jax.experimental.pallas import tpu as pltpu

VMEM = pl.BlockSpec(memory_space=pltpu.MemorySpace.VMEM)


# ------------------------------ fused kernel ---------------------------------

def _gsn_forward_kernel(
    x_ref, efeat_ref, ew_row_ref,
    nin_col_ref, nout_col_ref, nout_row_ref, n2g_row_ref,
    wlin_ref, blin_ref,
    wm1a_ref, wm1b_ref, wm1r_ref, bm1_ref, wm2_ref, bm2_ref,
    wu1a_ref, wu1b_ref, bu1_ref, wu2_ref, bu2_ref,
    gf_ref, nf_ref,
):
    """Whole GSN forward: linear -> L x (msg MLP, weighted scatter_add, update
    MLP + relu) -> global add pool.  Everything stays resident in VMEM."""
    n_nodes = x_ref.shape[0]
    n_edges = efeat_ref.shape[0]
    n_graphs = gf_ref.shape[0]
    num_layer = wm1a_ref.shape[0]

    f32 = jnp.float32
    dot = functools.partial(jnp.dot, preferred_element_type=f32)

    # layer-invariant edge-side message inputs [sf_in | sf_out | ef], (E, 2C+De)
    efeat = efeat_ref[...]

    # ---- index-derived operands: built ONCE, reused by every layer ----------
    col = jax.lax.broadcasted_iota(jnp.int32, (n_edges, n_nodes), 1)
    g_in = (col == nin_col_ref[...]).astype(f32)      # (E, N) gather one-hot
    g_out = (col == nout_col_ref[...]).astype(f32)    # (E, N) gather one-hot

    row = jax.lax.broadcasted_iota(jnp.int32, (n_nodes, n_edges), 0)
    # scatter_add operand with edge_weight folded in (saves a per-layer (E,H)
    # VPU multiply): update = scat_w @ msg.
    scat_w = (row == nout_row_ref[...]).astype(f32) * ew_row_ref[...]  # (N, E)

    grow = jax.lax.broadcasted_iota(jnp.int32, (n_graphs, n_nodes), 0)
    pool = (grow == n2g_row_ref[...]).astype(f32)     # (G, N) readout one-hot

    # ---- input linear --------------------------------------------------------
    h = dot(x_ref[...], wlin_ref[...]) + blin_ref[...]          # (N, H)

    # ---- message-passing layers (unrolled; h never leaves VMEM) --------------
    for l in range(num_layer):
        # Project h on the node side (N rows), then gather on the MXU.  Exact
        # reassociation because the one-hot gather is a 0/1 row selection:
        #   g_in @ (h @ Wa) == (g_in @ h) @ Wa
        # The sf/ef blocks of the first msg-MLP weight are consumed by a single
        # small matmul against the pre-gathered, layer-invariant `efeat`.
        pre1 = (dot(g_in, dot(h, wm1a_ref[l]))
                + dot(g_out, dot(h, wm1b_ref[l]))
                + dot(efeat, wm1r_ref[l]) + bm1_ref[l])          # (E, H)
        msg = dot(jnp.maximum(pre1, 0.0), wm2_ref[l]) + bm2_ref[l]   # (E, H)

        # aggregate: edge-weighted scatter_add as one MXU contraction
        update = dot(scat_w, msg)                                # (N, H)

        # combine: update_mlp(concat([h, update])) then relu (concat folded
        # into a block-split first matmul)
        upre1 = dot(h, wu1a_ref[l]) + dot(update, wu1b_ref[l]) + bu1_ref[l]
        h = jnp.maximum(
            dot(jnp.maximum(upre1, 0.0), wu2_ref[l]) + bu2_ref[l], 0.0)

    # ---- outputs: node features + global-add-pool readout --------------------
    nf_ref[...] = h
    gf_ref[...] = dot(pool, h)


# ------------------------------ model wrapper ---------------------------------

def init_gsn_params(key, input_dim, hidden_dim, edge_input_dim, num_layer,
                    counts_dim):
    def dense(k, i, o, scale=0.1):
        kw, kb = jax.random.split(k)
        return (scale * jax.random.normal(kw, (i, o), jnp.float32),
                scale * jax.random.normal(kb, (1, o), jnp.float32))

    keys = jax.random.split(key, 1 + num_layer)
    w_lin, b_lin = dense(keys[0], input_dim, hidden_dim)
    layers = []
    msg_in_dim = 2 * hidden_dim + 2 * counts_dim + edge_input_dim
    for i in range(num_layer):
        lk = jax.random.split(keys[1 + i], 4)
        wm1, bm1 = dense(lk[0], msg_in_dim, hidden_dim)
        wm2, bm2 = dense(lk[1], hidden_dim, hidden_dim)
        wu1, bu1 = dense(lk[2], 2 * hidden_dim, hidden_dim)
        wu2, bu2 = dense(lk[3], hidden_dim, hidden_dim)
        layers.append(dict(wm1=wm1, bm1=bm1, wm2=wm2, bm2=bm2,
                           wu1=wu1, bu1=bu1, wu2=wu2, bu2=bu2))
    return dict(w_lin=w_lin, b_lin=b_lin, layers=layers)


@functools.partial(jax.jit, static_argnames=("num_graphs",))
def gsn_forward(params, x, struct_feat, edge_feat, edge_weight,
                node_in, node_out, node2graph, num_graphs):
    n_nodes = x.shape[0]
    n_edges = edge_feat.shape[0]
    hid = params["w_lin"].shape[1]
    layers = params["layers"]

    def stack(name):
        return jnp.stack([lp[name] for lp in layers], axis=0)

    # Split the msg-MLP first weight by concat blocks [h_in|h_out|sf_in|sf_out|ef]
    # and the update-MLP first weight by [h|update]; stack along a layer axis.
    wm1 = stack("wm1")                       # (L, 2H+2C+De, H)
    wm1a = wm1[:, 0:hid]                     # (L, H, H)   for h[node_in]
    wm1b = wm1[:, hid:2 * hid]               # (L, H, H)   for h[node_out]
    wm1r = wm1[:, 2 * hid:]                  # (L, 2C+De, H) for [sf_in|sf_out|ef]
    wu1 = stack("wu1")                       # (L, 2H, H)
    wu1a = wu1[:, 0:hid]
    wu1b = wu1[:, hid:]

    node_in = node_in.astype(jnp.int32)
    node_out = node_out.astype(jnp.int32)
    sf = struct_feat.astype(jnp.float32)

    # Layer-invariant edge-side message features, built once (tiny gather).
    efeat = jnp.concatenate(
        [sf[node_in], sf[node_out], edge_feat.astype(jnp.float32)], axis=-1)

    nin_col = node_in.reshape(n_edges, 1)
    nout_col = node_out.reshape(n_edges, 1)
    nout_row = node_out.reshape(1, n_edges)
    ew_row = edge_weight.astype(jnp.float32).reshape(1, n_edges)
    n2g_row = node2graph.astype(jnp.int32).reshape(1, n_nodes)

    gf, nf = pl.pallas_call(
        _gsn_forward_kernel,
        out_shape=(jax.ShapeDtypeStruct((num_graphs, hid), jnp.float32),
                   jax.ShapeDtypeStruct((n_nodes, hid), jnp.float32)),
        in_specs=[VMEM] * 20,
        out_specs=(VMEM, VMEM),
    )(
        x.astype(jnp.float32), efeat, ew_row,
        nin_col, nout_col, nout_row, n2g_row,
        params["w_lin"], params["b_lin"],
        wm1a, wm1b, wm1r, stack("bm1"), stack("wm2"), stack("bm2"),
        wu1a, wu1b, stack("bu1"), stack("wu2"), stack("bu2"),
    )
    return gf, nf


# ------------------------------ pure-JAX ref -----------------------------------

def gsn_reference(params, x, sf, ef, ew, node_in, node_out, node2graph,
                  num_graphs):
    h = x @ params["w_lin"] + params["b_lin"]
    for lp in params["layers"]:
        msg_in = jnp.concatenate(
            [h[node_in], h[node_out], sf[node_in], sf[node_out], ef], axis=-1)
        msg = jnp.maximum(msg_in @ lp["wm1"] + lp["bm1"], 0.0) @ lp["wm2"] + lp["bm2"]
        upd = jnp.zeros_like(h).at[node_out].add(msg * ew[:, None])
        comb = jnp.concatenate([h, upd], axis=-1)
        h = jnp.maximum(
            jnp.maximum(comb @ lp["wu1"] + lp["bu1"], 0.0) @ lp["wu2"] + lp["bu2"],
            0.0)
    gf = jnp.zeros((num_graphs, h.shape[1]), jnp.float32).at[node2graph].add(h)
    return gf, h


# ----------------------------------- main --------------------------------------

if __name__ == "__main__":
    # model config
    input_dim = 8
    hidden_dim = 32
    edge_input_dim = 4
    num_layer = 2
    MIN_CYCLE, max_cycle = 3, 8
    counts_dim = max_cycle - MIN_CYCLE + 1        # 6

    # graph config: 2 graphs, 8 nodes each, 32 directed edges total
    n_nodes, n_edges, num_graphs = 16, 32, 2

    key = jax.random.PRNGKey(0)
    k_x, k_sf, k_ef, k_ew, k_ein, k_eout, k_params = jax.random.split(key, 7)

    x = jax.random.normal(k_x, (n_nodes, input_dim), jnp.float32)
    struct_feat = jax.random.randint(
        k_sf, (n_nodes, counts_dim), 0, 5).astype(jnp.float32)
    edge_feat = jax.random.normal(k_ef, (n_edges, edge_input_dim), jnp.float32)
    edge_weight = jax.random.uniform(
        k_ew, (n_edges,), jnp.float32, minval=0.5, maxval=1.5)
    # keep edges inside their own graph: half in graph 0 (nodes 0-7), half in graph 1 (8-15)
    e0 = jax.random.randint(k_ein, (n_edges // 2, 2), 0, 8)
    e1 = jax.random.randint(k_eout, (n_edges // 2, 2), 8, 16)
    edge_list = jnp.concatenate([e0, e1], axis=0).astype(jnp.int32)
    node_in = edge_list[:, 0]
    node_out = edge_list[:, 1]
    node2graph = jnp.concatenate(
        [jnp.zeros((8,), jnp.int32), jnp.ones((8,), jnp.int32)])

    params = init_gsn_params(k_params, input_dim, hidden_dim, edge_input_dim,
                             num_layer, counts_dim)

    graph_feat, node_feat = gsn_forward(
        params, x, struct_feat, edge_feat, edge_weight,
        node_in, node_out, node2graph, num_graphs)
    jax.block_until_ready(graph_feat)

    gf_ref, nf_ref = gsn_reference(
        params, x, struct_feat, edge_feat, edge_weight,
        node_in, node_out, node2graph, num_graphs)

    assert graph_feat.shape == (num_graphs, hidden_dim)
    assert node_feat.shape == (n_nodes, hidden_dim)
    assert jnp.allclose(node_feat, nf_ref, atol=2e-4, rtol=2e-4)
    assert jnp.allclose(graph_feat, gf_ref, atol=2e-4, rtol=2e-4)

    print("KERNEL_OK")
</pallas_src>

<mosaic_0001>
module attributes {stable_mosaic.version = 11 : i64} {
  func.func @_gsn_forward_kernel(%arg0: memref<16x8xf32, #tpu.memory_space<vmem>>, %arg1: memref<32x16xf32, #tpu.memory_space<vmem>>, %arg2: memref<1x32xf32, #tpu.memory_space<vmem>>, %arg3: memref<32x1xi32, #tpu.memory_space<vmem>>, %arg4: memref<32x1xi32, #tpu.memory_space<vmem>>, %arg5: memref<1x32xi32, #tpu.memory_space<vmem>>, %arg6: memref<1x16xi32, #tpu.memory_space<vmem>>, %arg7: memref<8x32xf32, #tpu.memory_space<vmem>>, %arg8: memref<1x32xf32, #tpu.memory_space<vmem>>, %arg9: memref<2x32x32xf32, #tpu.memory_space<vmem>>, %arg10: memref<2x32x32xf32, #tpu.memory_space<vmem>>, %arg11: memref<2x16x32xf32, #tpu.memory_space<vmem>>, %arg12: memref<2x1x32xf32, #tpu.memory_space<vmem>>, %arg13: memref<2x32x32xf32, #tpu.memory_space<vmem>>, %arg14: memref<2x1x32xf32, #tpu.memory_space<vmem>>, %arg15: memref<2x32x32xf32, #tpu.memory_space<vmem>>, %arg16: memref<2x32x32xf32, #tpu.memory_space<vmem>>, %arg17: memref<2x1x32xf32, #tpu.memory_space<vmem>>, %arg18: memref<2x32x32xf32, #tpu.memory_space<vmem>>, %arg19: memref<2x1x32xf32, #tpu.memory_space<vmem>>, %arg20: memref<2x32xf32, #tpu.memory_space<vmem>>, %arg21: memref<16x32xf32, #tpu.memory_space<vmem>>) attributes {dimension_semantics = [], scalar_prefetch = 0 : i64, scratch_operands = 0 : i64, tpu.core_type = #tpu.core_type<tc>} {
    %c0 = arith.constant 0 : index
    %c0_0 = arith.constant 0 : index
    %0 = vector.load %arg1[%c0, %c0_0] : memref<32x16xf32, #tpu.memory_space<vmem>>, vector<32x16xf32>
    %1 = tpu.iota {dimensions = array<i32: 1>} : vector<32x16xi32>
    %c0_1 = arith.constant 0 : index
    %c0_2 = arith.constant 0 : index
    %2 = vector.load %arg3[%c0_1, %c0_2] : memref<32x1xi32, #tpu.memory_space<vmem>>, vector<32x1xi32>
    %3 = vector.broadcast %2 : vector<32x1xi32> to vector<32x16xi32>
    %4 = arith.cmpi eq, %1, %3 : vector<32x16xi32>
    %5 = arith.extui %4 : vector<32x16xi1> to vector<32x16xi32>
    %6 = arith.sitofp %5 : vector<32x16xi32> to vector<32x16xf32>
    %c0_3 = arith.constant 0 : index
    %c0_4 = arith.constant 0 : index
    %7 = vector.load %arg4[%c0_3, %c0_4] : memref<32x1xi32, #tpu.memory_space<vmem>>, vector<32x1xi32>
    %8 = vector.broadcast %7 : vector<32x1xi32> to vector<32x16xi32>
    %9 = arith.cmpi eq, %1, %8 : vector<32x16xi32>
    %10 = arith.extui %9 : vector<32x16xi1> to vector<32x16xi32>
    %11 = arith.sitofp %10 : vector<32x16xi32> to vector<32x16xf32>
    %12 = tpu.iota {dimensions = array<i32: 0>} : vector<16x32xi32>
    %c0_5 = arith.constant 0 : index
    %c0_6 = arith.constant 0 : index
    %13 = vector.load %arg5[%c0_5, %c0_6] : memref<1x32xi32, #tpu.memory_space<vmem>>, vector<1x32xi32>
    %14 = vector.broadcast %13 : vector<1x32xi32> to vector<16x32xi32>
    %15 = arith.cmpi eq, %12, %14 : vector<16x32xi32>
    %16 = arith.extui %15 : vector<16x32xi1> to vector<16x32xi32>
    %17 = arith.sitofp %16 : vector<16x32xi32> to vector<16x32xf32>
    %c0_7 = arith.constant 0 : index
    %c0_8 = arith.constant 0 : index
    %18 = vector.load %arg2[%c0_7, %c0_8] : memref<1x32xf32, #tpu.memory_space<vmem>>, vector<1x32xf32>
    %19 = vector.broadcast %18 : vector<1x32xf32> to vector<16x32xf32>
    %20 = arith.mulf %17, %19 : vector<16x32xf32>
    %21 = tpu.iota {dimensions = array<i32: 0>} : vector<2x16xi32>
    %c0_9 = arith.constant 0 : index
    %c0_10 = arith.constant 0 : index
    %22 = vector.load %arg6[%c0_9, %c0_10] : memref<1x16xi32, #tpu.memory_space<vmem>>, vector<1x16xi32>
    %23 = vector.broadcast %22 : vector<1x16xi32> to vector<2x16xi32>
    %24 = arith.cmpi eq, %21, %23 : vector<2x16xi32>
    %25 = arith.extui %24 : vector<2x16xi1> to vector<2x16xi32>
    %26 = arith.sitofp %25 : vector<2x16xi32> to vector<2x16xf32>
    %c0_11 = arith.constant 0 : index
    %c0_12 = arith.constant 0 : index
    %27 = vector.load %arg0[%c0_11, %c0_12] : memref<16x8xf32, #tpu.memory_space<vmem>>, vector<16x8xf32>
    %c0_13 = arith.constant 0 : index
    %c0_14 = arith.constant 0 : index
    %28 = vector.load %arg7[%c0_13, %c0_14] : memref<8x32xf32, #tpu.memory_space<vmem>>, vector<8x32xf32>
    %cst = arith.constant dense<0.000000e+00> : vector<16x32xf32>
    %29 = tpu.matmul %27, %28, %cst {dimension_numbers = #tpu.dot_dimension_numbers<[1], [0], [0], [1], [0, 0, 1, 1], [], []>} : vector<16x8xf32>, vector<8x32xf32>, vector<16x32xf32> -> vector<16x32xf32>
    %c0_15 = arith.constant 0 : index
    %c0_16 = arith.constant 0 : index
    %30 = vector.load %arg8[%c0_15, %c0_16] : memref<1x32xf32, #tpu.memory_space<vmem>>, vector<1x32xf32>
    %31 = vector.broadcast %30 : vector<1x32xf32> to vector<16x32xf32>
    %32 = arith.addf %29, %31 : vector<16x32xf32>
    %c0_17 = arith.constant 0 : index
    %c0_18 = arith.constant 0 : index
    %c0_19 = arith.constant 0 : index
    %33 = vector.load %arg9[%c0_17, %c0_18, %c0_19] : memref<2x32x32xf32, #tpu.memory_space<vmem>>, vector<1x32x32xf32>
    %34 = vector.shape_cast %33 : vector<1x32x32xf32> to vector<32x32xf32>
    %cst_20 = arith.constant dense<0.000000e+00> : vector<16x32xf32>
    %35 = tpu.matmul %32, %34, %cst_20 {dimension_numbers = #tpu.dot_dimension_numbers<[1], [0], [0], [1], [0, 0, 1, 1], [], []>} : vector<16x32xf32>, vector<32x32xf32>, vector<16x32xf32> -> vector<16x32xf32>
    %cst_21 = arith.constant dense<0.000000e+00> : vector<32x32xf32>
    %36 = tpu.matmul %6, %35, %cst_21 {dimension_numbers = #tpu.dot_dimension_numbers<[1], [0], [0], [1], [0, 0, 1, 1], [], []>} : vector<32x16xf32>, vector<16x32xf32>, vector<32x32xf32> -> vector<32x32xf32>
    %c0_22 = arith.constant 0 : index
    %c0_23 = arith.constant 0 : index
    %c0_24 = arith.constant 0 : index
    %37 = vector.load %arg10[%c0_22, %c0_23, %c0_24] : memref<2x32x32xf32, #tpu.memory_space<vmem>>, vector<1x32x32xf32>
    %38 = vector.shape_cast %37 : vector<1x32x32xf32> to vector<32x32xf32>
    %cst_25 = arith.constant dense<0.000000e+00> : vector<16x32xf32>
    %39 = tpu.matmul %32, %38, %cst_25 {dimension_numbers = #tpu.dot_dimension_numbers<[1], [0], [0], [1], [0, 0, 1, 1], [], []>} : vector<16x32xf32>, vector<32x32xf32>, vector<16x32xf32> -> vector<16x32xf32>
    %cst_26 = arith.constant dense<0.000000e+00> : vector<32x32xf32>
    %40 = tpu.matmul %11, %39, %cst_26 {dimension_numbers = #tpu.dot_dimension_numbers<[1], [0], [0], [1], [0, 0, 1, 1], [], []>} : vector<32x16xf32>, vector<16x32xf32>, vector<32x32xf32> -> vector<32x32xf32>
    %41 = arith.addf %36, %40 : vector<32x32xf32>
    %c0_27 = arith.constant 0 : index
    %c0_28 = arith.constant 0 : index
    %c0_29 = arith.constant 0 : index
    %42 = vector.load %arg11[%c0_27, %c0_28, %c0_29] : memref<2x16x32xf32, #tpu.memory_space<vmem>>, vector<1x16x32xf32>
    %43 = vector.shape_cast %42 : vector<1x16x32xf32> to vector<16x32xf32>
    %cst_30 = arith.constant dense<0.000000e+00> : vector<32x32xf32>
    %44 = tpu.matmul %0, %43, %cst_30 {dimension_numbers = #tpu.dot_dimension_numbers<[1], [0], [0], [1], [0, 0, 1, 1], [], []>} : vector<32x16xf32>, vector<16x32xf32>, vector<32x32xf32> -> vector<32x32xf32>
    %45 = arith.addf %41, %44 : vector<32x32xf32>
    %c0_31 = arith.constant 0 : index
    %c0_32 = arith.constant 0 : index
    %c0_33 = arith.constant 0 : index
    %46 = vector.load %arg12[%c0_31, %c0_32, %c0_33] : memref<2x1x32xf32, #tpu.memory_space<vmem>>, vector<1x1x32xf32>
    %47 = vector.shape_cast %46 : vector<1x1x32xf32> to vector<1x32xf32>
    %48 = vector.broadcast %47 : vector<1x32xf32> to vector<32x32xf32>
    %49 = arith.addf %45, %48 : vector<32x32xf32>
    %cst_34 = arith.constant 0.000000e+00 : f32
    %50 = vector.broadcast %cst_34 : f32 to vector<32x32xf32>
    %51 = arith.maximumf %49, %50 : vector<32x32xf32>
    %c0_35 = arith.constant 0 : index
    %c0_36 = arith.constant 0 : index
    %c0_37 = arith.constant 0 : index
    %52 = vector.load %arg13[%c0_35, %c0_36, %c0_37] : memref<2x32x32xf32, #tpu.memory_space<vmem>>, vector<1x32x32xf32>
    %53 = vector.shape_cast %52 : vector<1x32x32xf32> to vector<32x32xf32>
    %cst_38 = arith.constant dense<0.000000e+00> : vector<32x32xf32>
    %54 = tpu.matmul %51, %53, %cst_38 {dimension_numbers = #tpu.dot_dimension_numbers<[1], [0], [0], [1], [0, 0, 1, 1], [], []>} : vector<32x32xf32>, vector<32x32xf32>, vector<32x32xf32> -> vector<32x32xf32>
    %c0_39 = arith.constant 0 : index
    %c0_40 = arith.constant 0 : index
    %c0_41 = arith.constant 0 : index
    %55 = vector.load %arg14[%c0_39, %c0_40, %c0_41] : memref<2x1x32xf32, #tpu.memory_space<vmem>>, vector<1x1x32xf32>
    %56 = vector.shape_cast %55 : vector<1x1x32xf32> to vector<1x32xf32>
    %57 = vector.broadcast %56 : vector<1x32xf32> to vector<32x32xf32>
    %58 = arith.addf %54, %57 : vector<32x32xf32>
    %cst_42 = arith.constant dense<0.000000e+00> : vector<16x32xf32>
    %59 = tpu.matmul %20, %58, %cst_42 {dimension_numbers = #tpu.dot_dimension_numbers<[1], [0], [0], [1], [0, 0, 1, 1], [], []>} : vector<16x32xf32>, vector<32x32xf32>, vector<16x32xf32> -> vector<16x32xf32>
    %c0_43 = arith.constant 0 : index
    %c0_44 = arith.constant 0 : index
    %c0_45 = arith.constant 0 : index
    %60 = vector.load %arg15[%c0_43, %c0_44, %c0_45] : memref<2x32x32xf32, #tpu.memory_space<vmem>>, vector<1x32x32xf32>
    %61 = vector.shape_cast %60 : vector<1x32x32xf32> to vector<32x32xf32>
    %cst_46 = arith.constant dense<0.000000e+00> : vector<16x32xf32>
    %62 = tpu.matmul %32, %61, %cst_46 {dimension_numbers = #tpu.dot_dimension_numbers<[1], [0], [0], [1], [0, 0, 1, 1], [], []>} : vector<16x32xf32>, vector<32x32xf32>, vector<16x32xf32> -> vector<16x32xf32>
    %c0_47 = arith.constant 0 : index
    %c0_48 = arith.constant 0 : index
    %c0_49 = arith.constant 0 : index
    %63 = vector.load %arg16[%c0_47, %c0_48, %c0_49] : memref<2x32x32xf32, #tpu.memory_space<vmem>>, vector<1x32x32xf32>
    %64 = vector.shape_cast %63 : vector<1x32x32xf32> to vector<32x32xf32>
    %cst_50 = arith.constant dense<0.000000e+00> : vector<16x32xf32>
    %65 = tpu.matmul %59, %64, %cst_50 {dimension_numbers = #tpu.dot_dimension_numbers<[1], [0], [0], [1], [0, 0, 1, 1], [], []>} : vector<16x32xf32>, vector<32x32xf32>, vector<16x32xf32> -> vector<16x32xf32>
    %66 = arith.addf %62, %65 : vector<16x32xf32>
    %c0_51 = arith.constant 0 : index
    %c0_52 = arith.constant 0 : index
    %c0_53 = arith.constant 0 : index
    %67 = vector.load %arg17[%c0_51, %c0_52, %c0_53] : memref<2x1x32xf32, #tpu.memory_space<vmem>>, vector<1x1x32xf32>
    %68 = vector.shape_cast %67 : vector<1x1x32xf32> to vector<1x32xf32>
    %69 = vector.broadcast %68 : vector<1x32xf32> to vector<16x32xf32>
    %70 = arith.addf %66, %69 : vector<16x32xf32>
    %cst_54 = arith.constant 0.000000e+00 : f32
    %71 = vector.broadcast %cst_54 : f32 to vector<16x32xf32>
    %72 = arith.maximumf %70, %71 : vector<16x32xf32>
    %c0_55 = arith.constant 0 : index
    %c0_56 = arith.constant 0 : index
    %c0_57 = arith.constant 0 : index
    %73 = vector.load %arg18[%c0_55, %c0_56, %c0_57] : memref<2x32x32xf32, #tpu.memory_space<vmem>>, vector<1x32x32xf32>
    %74 = vector.shape_cast %73 : vector<1x32x32xf32> to vector<32x32xf32>
    %cst_58 = arith.constant dense<0.000000e+00> : vector<16x32xf32>
    %75 = tpu.matmul %72, %74, %cst_58 {dimension_numbers = #tpu.dot_dimension_numbers<[1], [0], [0], [1], [0, 0, 1, 1], [], []>} : vector<16x32xf32>, vector<32x32xf32>, vector<16x32xf32> -> vector<16x32xf32>
    %c0_59 = arith.constant 0 : index
    %c0_60 = arith.constant 0 : index
    %c0_61 = arith.constant 0 : index
    %76 = vector.load %arg19[%c0_59, %c0_60, %c0_61] : memref<2x1x32xf32, #tpu.memory_space<vmem>>, vector<1x1x32xf32>
    %77 = vector.shape_cast %76 : vector<1x1x32xf32> to vector<1x32xf32>
    %78 = vector.broadcast %77 : vector<1x32xf32> to vector<16x32xf32>
    %79 = arith.addf %75, %78 : vector<16x32xf32>
    %cst_62 = arith.constant 0.000000e+00 : f32
    %80 = vector.broadcast %cst_62 : f32 to vector<16x32xf32>
    %81 = arith.maximumf %79, %80 : vector<16x32xf32>
    %c1 = arith.constant 1 : index
    %c0_63 = arith.constant 0 : index
    %c0_64 = arith.constant 0 : index
    %82 = vector.load %arg9[%c1, %c0_63, %c0_64] : memref<2x32x32xf32, #tpu.memory_space<vmem>>, vector<1x32x32xf32>
    %83 = vector.shape_cast %82 : vector<1x32x32xf32> to vector<32x32xf32>
    %cst_65 = arith.constant dense<0.000000e+00> : vector<16x32xf32>
    %84 = tpu.matmul %81, %83, %cst_65 {dimension_numbers = #tpu.dot_dimension_numbers<[1], [0], [0], [1], [0, 0, 1, 1], [], []>} : vector<16x32xf32>, vector<32x32xf32>, vector<16x32xf32> -> vector<16x32xf32>
    %cst_66 = arith.constant dense<0.000000e+00> : vector<32x32xf32>
    %85 = tpu.matmul %6, %84, %cst_66 {dimension_numbers = #tpu.dot_dimension_numbers<[1], [0], [0], [1], [0, 0, 1, 1], [], []>} : vector<32x16xf32>, vector<16x32xf32>, vector<32x32xf32> -> vector<32x32xf32>
    %c1_67 = arith.constant 1 : index
    %c0_68 = arith.constant 0 : index
    %c0_69 = arith.constant 0 : index
    %86 = vector.load %arg10[%c1_67, %c0_68, %c0_69] : memref<2x32x32xf32, #tpu.memory_space<vmem>>, vector<1x32x32xf32>
    %87 = vector.shape_cast %86 : vector<1x32x32xf32> to vector<32x32xf32>
    %cst_70 = arith.constant dense<0.000000e+00> : vector<16x32xf32>
    %88 = tpu.matmul %81, %87, %cst_70 {dimension_numbers = #tpu.dot_dimension_numbers<[1], [0], [0], [1], [0, 0, 1, 1], [], []>} : vector<16x32xf32>, vector<32x32xf32>, vector<16x32xf32> -> vector<16x32xf32>
    %cst_71 = arith.constant dense<0.000000e+00> : vector<32x32xf32>
    %89 = tpu.matmul %11, %88, %cst_71 {dimension_numbers = #tpu.dot_dimension_numbers<[1], [0], [0], [1], [0, 0, 1, 1], [], []>} : vector<32x16xf32>, vector<16x32xf32>, vector<32x32xf32> -> vector<32x32xf32>
    %90 = arith.addf %85, %89 : vector<32x32xf32>
    %c1_72 = arith.constant 1 : index
    %c0_73 = arith.constant 0 : index
    %c0_74 = arith.constant 0 : index
    %91 = vector.load %arg11[%c1_72, %c0_73, %c0_74] : memref<2x16x32xf32, #tpu.memory_space<vmem>>, vector<1x16x32xf32>
    %92 = vector.shape_cast %91 : vector<1x16x32xf32> to vector<16x32xf32>
    %cst_75 = arith.constant dense<0.000000e+00> : vector<32x32xf32>
    %93 = tpu.matmul %0, %92, %cst_75 {dimension_numbers = #tpu.dot_dimension_numbers<[1], [0], [0], [1], [0, 0, 1, 1], [], []>} : vector<32x16xf32>, vector<16x32xf32>, vector<32x32xf32> -> vector<32x32xf32>
    %94 = arith.addf %90, %93 : vector<32x32xf32>
    %c1_76 = arith.constant 1 : index
    %c0_77 = arith.constant 0 : index
    %c0_78 = arith.constant 0 : index
    %95 = vector.load %arg12[%c1_76, %c0_77, %c0_78] : memref<2x1x32xf32, #tpu.memory_space<vmem>>, vector<1x1x32xf32>
    %96 = vector.shape_cast %95 : vector<1x1x32xf32> to vector<1x32xf32>
    %97 = vector.broadcast %96 : vector<1x32xf32> to vector<32x32xf32>
    %98 = arith.addf %94, %97 : vector<32x32xf32>
    %cst_79 = arith.constant 0.000000e+00 : f32
    %99 = vector.broadcast %cst_79 : f32 to vector<32x32xf32>
    %100 = arith.maximumf %98, %99 : vector<32x32xf32>
    %c1_80 = arith.constant 1 : index
    %c0_81 = arith.constant 0 : index
    %c0_82 = arith.constant 0 : index
    %101 = vector.load %arg13[%c1_80, %c0_81, %c0_82] : memref<2x32x32xf32, #tpu.memory_space<vmem>>, vector<1x32x32xf32>
    %102 = vector.shape_cast %101 : vector<1x32x32xf32> to vector<32x32xf32>
    %cst_83 = arith.constant dense<0.000000e+00> : vector<32x32xf32>
    %103 = tpu.matmul %100, %102, %cst_83 {dimension_numbers = #tpu.dot_dimension_numbers<[1], [0], [0], [1], [0, 0, 1, 1], [], []>} : vector<32x32xf32>, vector<32x32xf32>, vector<32x32xf32> -> vector<32x32xf32>
    %c1_84 = arith.constant 1 : index
    %c0_85 = arith.constant 0 : index
    %c0_86 = arith.constant 0 : index
    %104 = vector.load %arg14[%c1_84, %c0_85, %c0_86] : memref<2x1x32xf32, #tpu.memory_space<vmem>>, vector<1x1x32xf32>
    %105 = vector.shape_cast %104 : vector<1x1x32xf32> to vector<1x32xf32>
    %106 = vector.broadcast %105 : vector<1x32xf32> to vector<32x32xf32>
    %107 = arith.addf %103, %106 : vector<32x32xf32>
    %cst_87 = arith.constant dense<0.000000e+00> : vector<16x32xf32>
    %108 = tpu.matmul %20, %107, %cst_87 {dimension_numbers = #tpu.dot_dimension_numbers<[1], [0], [0], [1], [0, 0, 1, 1], [], []>} : vector<16x32xf32>, vector<32x32xf32>, vector<16x32xf32> -> vector<16x32xf32>
    %c1_88 = arith.constant 1 : index
    %c0_89 = arith.constant 0 : index
    %c0_90 = arith.constant 0 : index
    %109 = vector.load %arg15[%c1_88, %c0_89, %c0_90] : memref<2x32x32xf32, #tpu.memory_space<vmem>>, vector<1x32x32xf32>
    %110 = vector.shape_cast %109 : vector<1x32x32xf32> to vector<32x32xf32>
    %cst_91 = arith.constant dense<0.000000e+00> : vector<16x32xf32>
    %111 = tpu.matmul %81, %110, %cst_91 {dimension_numbers = #tpu.dot_dimension_numbers<[1], [0], [0], [1], [0, 0, 1, 1], [], []>} : vector<16x32xf32>, vector<32x32xf32>, vector<16x32xf32> -> vector<16x32xf32>
    %c1_92 = arith.constant 1 : index
    %c0_93 = arith.constant 0 : index
    %c0_94 = arith.constant 0 : index
    %112 = vector.load %arg16[%c1_92, %c0_93, %c0_94] : memref<2x32x32xf32, #tpu.memory_space<vmem>>, vector<1x32x32xf32>
    %113 = vector.shape_cast %112 : vector<1x32x32xf32> to vector<32x32xf32>
    %cst_95 = arith.constant dense<0.000000e+00> : vector<16x32xf32>
    %114 = tpu.matmul %108, %113, %cst_95 {dimension_numbers = #tpu.dot_dimension_numbers<[1], [0], [0], [1], [0, 0, 1, 1], [], []>} : vector<16x32xf32>, vector<32x32xf32>, vector<16x32xf32> -> vector<16x32xf32>
    %115 = arith.addf %111, %114 : vector<16x32xf32>
    %c1_96 = arith.constant 1 : index
    %c0_97 = arith.constant 0 : index
    %c0_98 = arith.constant 0 : index
    %116 = vector.load %arg17[%c1_96, %c0_97, %c0_98] : memref<2x1x32xf32, #tpu.memory_space<vmem>>, vector<1x1x32xf32>
    %117 = vector.shape_cast %116 : vector<1x1x32xf32> to vector<1x32xf32>
    %118 = vector.broadcast %117 : vector<1x32xf32> to vector<16x32xf32>
    %119 = arith.addf %115, %118 : vector<16x32xf32>
    %cst_99 = arith.constant 0.000000e+00 : f32
    %120 = vector.broadcast %cst_99 : f32 to vector<16x32xf32>
    %121 = arith.maximumf %119, %120 : vector<16x32xf32>
    %c1_100 = arith.constant 1 : index
    %c0_101 = arith.constant 0 : index
    %c0_102 = arith.constant 0 : index
    %122 = vector.load %arg18[%c1_100, %c0_101, %c0_102] : memref<2x32x32xf32, #tpu.memory_space<vmem>>, vector<1x32x32xf32>
    %123 = vector.shape_cast %122 : vector<1x32x32xf32> to vector<32x32xf32>
    %cst_103 = arith.constant dense<0.000000e+00> : vector<16x32xf32>
    %124 = tpu.matmul %121, %123, %cst_103 {dimension_numbers = #tpu.dot_dimension_numbers<[1], [0], [0], [1], [0, 0, 1, 1], [], []>} : vector<16x32xf32>, vector<32x32xf32>, vector<16x32xf32> -> vector<16x32xf32>
    %c1_104 = arith.constant 1 : index
    %c0_105 = arith.constant 0 : index
    %c0_106 = arith.constant 0 : index
    %125 = vector.load %arg19[%c1_104, %c0_105, %c0_106] : memref<2x1x32xf32, #tpu.memory_space<vmem>>, vector<1x1x32xf32>
    %126 = vector.shape_cast %125 : vector<1x1x32xf32> to vector<1x32xf32>
    %127 = vector.broadcast %126 : vector<1x32xf32> to vector<16x32xf32>
    %128 = arith.addf %124, %127 : vector<16x32xf32>
    %cst_107 = arith.constant 0.000000e+00 : f32
    %129 = vector.broadcast %cst_107 : f32 to vector<16x32xf32>
    %130 = arith.maximumf %128, %129 : vector<16x32xf32>
    %c0_108 = arith.constant 0 : index
    %c0_109 = arith.constant 0 : index
    %131 = vector.load %arg21[%c0_108, %c0_109] : memref<16x32xf32, #tpu.memory_space<vmem>>, vector<16x32xf32>
    tpu.vector_store %arg21[%c0_108, %c0_109], %130 {strides = array<i32>} : memref<16x32xf32, #tpu.memory_space<vmem>>, vector<16x32xf32>,
    %cst_110 = arith.constant dense<0.000000e+00> : vector<2x32xf32>
    %132 = tpu.matmul %26, %130, %cst_110 {dimension_numbers = #tpu.dot_dimension_numbers<[1], [0], [0], [1], [0, 0, 1, 1], [], []>} : vector<2x16xf32>, vector<16x32xf32>, vector<2x32xf32> -> vector<2x32xf32>
    %c0_111 = arith.constant 0 : index
    %c0_112 = arith.constant 0 : index
    %133 = vector.load %arg20[%c0_111, %c0_112] : memref<2x32xf32, #tpu.memory_space<vmem>>, vector<2x32xf32>
    tpu.vector_store %arg20[%c0_111, %c0_112], %132 {strides = array<i32>} : memref<2x32xf32, #tpu.memory_space<vmem>>, vector<2x32xf32>,
    return
  }
}

</mosaic_0001>

<llo_original>
// kernel: gsn_forward.1
$region0: #{gsn_forward.1}
  #allocation0 [shape = 'u32[]', space=smem, size = 0x4, offset = 0x4, fixed_abs, tag = 'smem constant byte address 0x4 - core index']
  #allocation1 [shape = 'u32[144,128]{1,0:T(1,128)}', space=vmem, size = 0x12000, scoped, tag = 'internal scratch']
  %s0 = inlined_call_operand.vmem [shape: f32[16,8], index: 0, kind: input, shape index: {}]
  %s1 = inlined_call_operand.vmem [shape: f32[32,16], index: 1, kind: input, shape index: {}]
  %s2 = inlined_call_operand.vmem [shape: f32[1,32], index: 2, kind: input, shape index: {}]
  %s3 = inlined_call_operand.vmem [shape: s32[32,1], index: 3, kind: input, shape index: {}]
  %s4 = inlined_call_operand.vmem [shape: s32[32,1], index: 4, kind: input, shape index: {}]
  %s5 = inlined_call_operand.vmem [shape: s32[1,32], index: 5, kind: input, shape index: {}]
  %s6 = inlined_call_operand.vmem [shape: s32[1,16], index: 6, kind: input, shape index: {}]
  %s7 = inlined_call_operand.vmem [shape: f32[8,32], index: 7, kind: input, shape index: {}]
  %s8 = inlined_call_operand.vmem [shape: f32[1,32], index: 8, kind: input, shape index: {}]
  %s9 = inlined_call_operand.vmem [shape: f32[2,32,32], index: 9, kind: input, shape index: {}]
  %s10 = inlined_call_operand.vmem [shape: f32[2,32,32], index: 10, kind: input, shape index: {}]
  %s11 = inlined_call_operand.vmem [shape: f32[2,16,32], index: 11, kind: input, shape index: {}]
  %s12 = inlined_call_operand.vmem [shape: f32[2,1,32], index: 12, kind: input, shape index: {}]
  %s13 = inlined_call_operand.vmem [shape: f32[2,32,32], index: 13, kind: input, shape index: {}]
  %s14 = inlined_call_operand.vmem [shape: f32[2,1,32], index: 14, kind: input, shape index: {}]
  %s15 = inlined_call_operand.vmem [shape: f32[2,32,32], index: 15, kind: input, shape index: {}]
  %s16 = inlined_call_operand.vmem [shape: f32[2,32,32], index: 16, kind: input, shape index: {}]
  %s17 = inlined_call_operand.vmem [shape: f32[2,1,32], index: 17, kind: input, shape index: {}]
  %s18 = inlined_call_operand.vmem [shape: f32[2,32,32], index: 18, kind: input, shape index: {}]
  %s19 = inlined_call_operand.vmem [shape: f32[2,1,32], index: 19, kind: input, shape index: {}]
  %s20 = inlined_call_operand.hbm [shape: f32[2,32], index: 20, kind: output, shape index: {0}]
  %s21 = inlined_call_operand.hbm [shape: f32[16,32], index: 21, kind: output, shape index: {1}]
  %22 = xla_tuple %s20, %s21
  %s23 = sld [smem:[#allocation0]]
  $region98: #{gsn_forward.1} parent=0
    _
  %s25 = ssub.s32 1, %s23
  %s26 = scalar_select 0, %s25, %s23
  $region1: #{gsn_forward.1} parent=0
    #allocation2 [shape = 'u8[1024]{0}', space=vmem, size = 0x400, scoped, tag = 'output window, operand 0, single buffered']
    #allocation3 [shape = 's32[1]{0}', space=sflag, size = 0x4, scoped, tag = 'scoped memory for gsn_forward.1']
    #allocation4 [shape = 'u8[8192]{0}', space=vmem, size = 0x2000, scoped, tag = 'output window, operand 1, single buffered']
    #allocation5 [shape = 's32[1]{0}', space=sflag, size = 0x4, scoped, tag = 'scoped memory for gsn_forward.1']
    %27 = vsyncpa [#allocation3], 0
    %28 = vsyncpa [#allocation5], 0
    // Predicated region
    $region2: #{gsn_forward.1} parent=1 // pred_check
      _
    $region3: #{gsn_forward.1} parent=1 // pred_check_branch
      %30 = sbr.rel (0) target = $region5
    $region4: #{gsn_forward.1} parent=1 // pred_region
      _
    $region5: #{gsn_forward.1} parent=1 // pred_fallthru
      _
    // Predicated region
    $region6: #{gsn_forward.1} parent=1 // pred_check
      _
    $region7: #{gsn_forward.1} parent=1 // pred_check_branch
      %32 = sbr.rel (0) target = $region9
    $region8: #{gsn_forward.1} parent=1 // pred_region
      _
    $region9: #{gsn_forward.1} parent=1 // pred_fallthru
      _
    // Predicated region
    $region10: #{gsn_forward.1} parent=1 // pred_check
      _
    $region11: #{gsn_forward.1} parent=1 // pred_check_branch
      %34 = sbr.rel (0) target = $region13
    $region12: #{gsn_forward.1} parent=1 // pred_region
      _
    $region13: #{gsn_forward.1} parent=1 // pred_fallthru
      _
    // Predicated region
    $region14: #{gsn_forward.1} parent=1 // pred_check
      _
    $region15: #{gsn_forward.1} parent=1 // pred_check_branch
      %36 = sbr.rel (0) target = $region17
    $region16: #{gsn_forward.1} parent=1 // pred_region
      _
    $region17: #{gsn_forward.1} parent=1 // pred_fallthru
      _
    // Predicated region
    $region18: #{gsn_forward.1} parent=1 // pred_check
      _
    $region19: #{gsn_forward.1} parent=1 // pred_check_branch
      %38 = sbr.rel (0) target = $region21
    $region20: #{gsn_forward.1} parent=1 // pred_region
      _
    $region21: #{gsn_forward.1} parent=1 // pred_fallthru
      _
    // Predicated region
    $region22: #{gsn_forward.1} parent=1 // pred_check
      _
    $region23: #{gsn_forward.1} parent=1 // pred_check_branch
      %40 = sbr.rel (0) target = $region25
    $region24: #{gsn_forward.1} parent=1 // pred_region
      _
    $region25: #{gsn_forward.1} parent=1 // pred_fallthru
      _
    // Predicated region
    $region26: #{gsn_forward.1} parent=1 // pred_check
      _
    $region27: #{gsn_forward.1} parent=1 // pred_check_branch
      %42 = sbr.rel (0) target = $region29
    $region28: #{gsn_forward.1} parent=1 // pred_region
      _
    $region29: #{gsn_forward.1} parent=1 // pred_fallthru
      _
    // Predicated region
    $region30: #{gsn_forward.1} parent=1 // pred_check
      _
    $region31: #{gsn_forward.1} parent=1 // pred_check_branch
      %44 = sbr.rel (0) target = $region33
    $region32: #{gsn_forward.1} parent=1 // pred_region
      _
    $region33: #{gsn_forward.1} parent=1 // pred_fallthru
      _
    // Predicated region
    $region34: #{gsn_forward.1} parent=1 // pred_check
      _
    $region35: #{gsn_forward.1} parent=1 // pred_check_branch
      %46 = sbr.rel (0) target = $region37
    $region36: #{gsn_forward.1} parent=1 // pred_region
      _
    $region37: #{gsn_forward.1} parent=1 // pred_fallthru
      _
    // Predicated region
    $region38: #{gsn_forward.1} parent=1 // pred_check
      _
    $region39: #{gsn_forward.1} parent=1 // pred_check_branch
      %48 = sbr.rel (0) target = $region41
    $region40: #{gsn_forward.1} parent=1 // pred_region
      _
    $region41: #{gsn_forward.1} parent=1 // pred_fallthru
      _
    // Predicated region
    $region42: #{gsn_forward.1} parent=1 // pred_check
      _
    $region43: #{gsn_forward.1} parent=1 // pred_check_branch
      %50 = sbr.rel (0) target = $region45
    $region44: #{gsn_forward.1} parent=1 // pred_region
      _
    $region45: #{gsn_forward.1} parent=1 // pred_fallthru
      _
    // Predicated region
    $region46: #{gsn_forward.1} parent=1 // pred_check
      _
    $region47: #{gsn_forward.1} parent=1 // pred_check_branch
      %52 = sbr.rel (0) target = $region49
    $region48: #{gsn_forward.1} parent=1 // pred_region
      _
    $region49: #{gsn_forward.1} parent=1 // pred_fallthru
      _
    // Predicated region
    $region50: #{gsn_forward.1} parent=1 // pred_check
      _
    $region51: #{gsn_forward.1} parent=1 // pred_check_branch
      %54 = sbr.rel (0) target = $region53
    $region52: #{gsn_forward.1} parent=1 // pred_region
      _
    $region53: #{gsn_forward.1} parent=1 // pred_fallthru
      _
    // Predicated region
    $region54: #{gsn_forward.1} parent=1 // pred_check
      _
    $region55: #{gsn_forward.1} parent=1 // pred_check_branch
      %56 = sbr.rel (0) target = $region57
    $region56: #{gsn_forward.1} parent=1 // pred_region
      _
    $region57: #{gsn_forward.1} parent=1 // pred_fallthru
      _
    // Predicated region
    $region58: #{gsn_forward.1} parent=1 // pred_check
      _
    $region59: #{gsn_forward.1} parent=1 // pred_check_branch
      %58 = sbr.rel (0) target = $region61
    $region60: #{gsn_forward.1} parent=1 // pred_region
      _
    $region61: #{gsn_forward.1} parent=1 // pred_fallthru
      _
    // Predicated region
    $region62: #{gsn_forward.1} parent=1 // pred_check
      _
    $region63: #{gsn_forward.1} parent=1 // pred_check_branch
      %60 = sbr.rel (0) target = $region65
    $region64: #{gsn_forward.1} parent=1 // pred_region
      _
    $region65: #{gsn_forward.1} parent=1 // pred_fallthru
      _
    // Predicated region
    $region66: #{gsn_forward.1} parent=1 // pred_check
      _
    $region67: #{gsn_forward.1} parent=1 // pred_check_branch
      %62 = sbr.rel (0) target = $region69
    $region68: #{gsn_forward.1} parent=1 // pred_region
      _
    $region69: #{gsn_forward.1} parent=1 // pred_fallthru
      _
    // Predicated region
    $region70: #{gsn_forward.1} parent=1 // pred_check
      _
    $region71: #{gsn_forward.1} parent=1 // pred_check_branch
      %64 = sbr.rel (0) target = $region73
    $region72: #{gsn_forward.1} parent=1 // pred_region
      _
    $region73: #{gsn_forward.1} parent=1 // pred_fallthru
      _
    // Predicated region
    $region74: #{gsn_forward.1} parent=1 // pred_check
      _
    $region75: #{gsn_forward.1} parent=1 // pred_check_branch
      %66 = sbr.rel (0) target = $region77
    $region76: #{gsn_forward.1} parent=1 // pred_region
      _
    $region77: #{gsn_forward.1} parent=1 // pred_fallthru
      _
    // Predicated region
    $region78: #{gsn_forward.1} parent=1 // pred_check
      _
    $region79: #{gsn_forward.1} parent=1 // pred_check_branch
      %68 = sbr.rel (0) target = $region81
    $region80: #{gsn_forward.1} parent=1 // pred_region
      _
    $region81: #{gsn_forward.1} parent=1 // pred_fallthru
      _
    %v69 = vld [vmem:[%s1] sm:$0xff]
    %v70 = vld [vmem:[%s1 + $0x8] sm:$0xff]
    %v71 = vld [vmem:[%s1 + $0x10] sm:$0xff]
    %v72 = vld [vmem:[%s1 + $0x18] sm:$0xff]
    %v73 = vlaneseq
    %v74 = vand.u32 %v73, 127
    %v75 = vld [vmem:[%s3] sm:$0xff]
    %v76 = vld [vmem:[%s3 + $0x8] sm:$0xff]
    %v77 = vld [vmem:[%s3 + $0x10] sm:$0xff]
    %v78 = vld [vmem:[%s3 + $0x18] sm:$0xff]
    %79 = vset.pattern.permute.xlu0 0
    %80 = vperm.xlu0 %79, %v75
    %v81 = vpop.permute.xlu0 %80
    %82 = vset.pattern.permute.xlu0 0
    %83 = vperm.xlu0 %82, %v76
    %v84 = vpop.permute.xlu0 %83
    %85 = vset.pattern.permute.xlu0 0
    %86 = vperm.xlu0 %85, %v77
    %v87 = vpop.permute.xlu0 %86
    %88 = vset.pattern.permute.xlu0 0
    %89 = vperm.xlu0 %88, %v78
    %v90 = vpop.permute.xlu0 %89
    %vm91 = vcmp.eq.s32.totalorder %v74, %v81
    %vm92 = vcmp.eq.s32.totalorder %v74, %v84
    %vm93 = vcmp.eq.s32.totalorder %v74, %v87
    %vm94 = vcmp.eq.s32.totalorder %v74, %v90
    %v95 = vsel %vm91, 1, 0
    %v96 = vsel %vm92, 1, 0
    %v97 = vsel %vm93, 1, 0
    %v98 = vsel %vm94, 1, 0
    %v99 = vcvt.s32.f32 %v95
    %v100 = vcvt.s32.f32 %v96
    %v101 = vcvt.s32.f32 %v97
    %v102 = vcvt.s32.f32 %v98
    %v103 = vld [vmem:[%s4] sm:$0xff]
    %v104 = vld [vmem:[%s4 + $0x8] sm:$0xff]
    %v105 = vld [vmem:[%s4 + $0x10] sm:$0xff]
    %v106 = vld [vmem:[%s4 + $0x18] sm:$0xff]
    %107 = vset.pattern.permute.xlu0 0
    %108 = vperm.xlu0 %107, %v103
    %v109 = vpop.permute.xlu0 %108
    %110 = vset.pattern.permute.xlu0 0
    %111 = vperm.xlu0 %110, %v104
    %v112 = vpop.permute.xlu0 %111
    %113 = vset.pattern.permute.xlu0 0
    %114 = vperm.xlu0 %113, %v105
    %v115 = vpop.permute.xlu0 %114
    %116 = vset.pattern.permute.xlu0 0
    %117 = vperm.xlu0 %116, %v106
    %v118 = vpop.permute.xlu0 %117
    %vm119 = vcmp.eq.s32.totalorder %v74, %v109
    %vm120 = vcmp.eq.s32.totalorder %v74, %v112
    %vm121 = vcmp.eq.s32.totalorder %v74, %v115
    %vm122 = vcmp.eq.s32.totalorder %v74, %v118
    %v123 = vsel %vm119, 1, 0
    %v124 = vsel %vm120, 1, 0
    %v125 = vsel %vm121, 1, 0
    %v126 = vsel %vm122, 1, 0
    %v127 = vcvt.s32.f32 %v123
    %v128 = vcvt.s32.f32 %v124
    %v129 = vcvt.s32.f32 %v125
    %v130 = vcvt.s32.f32 %v126
    %v131 = vlaneseq
    %v132 = vshrl.u32 %v131, 7
    %v133 = vadd.s32 %v132, 8
    %v134 = vld [vmem:[%s5] sm:$0x1]
    %v135 = vlaneseq
    %v136 = vshrl.u32 %v135, 7
    %v137 = vsub.s32 0, %v136
    %v138 = vrot.slane %v134, %v137
    %vm139 = vcmp.eq.s32.totalorder %v132, %v138
    %vm140 = vcmp.eq.s32.totalorder %v133, %v138
    %v141 = vsel %vm139, 1, 0
    %v142 = vsel %vm140, 1, 0
    %v143 = vcvt.s32.f32 %v141
    %v144 = vcvt.s32.f32 %v142
    %v145 = vld [vmem:[%s2] sm:$0x1]
    %v147 = vlaneseq
    %v148 = vshrl.u32 %v147, 7
    %v149 = vsub.s32 0, %v148
    %v150 = vrot.slane %v145, %v149
    %v152 = vmul.f32 %v143, %v150
    %v153 = vmul.f32 %v144, %v150
    %v154 = vld [vmem:[%s6] sm:$0x1]
    %v155 = vlaneseq
    %v156 = vshrl.u32 %v155, 7
    %v157 = vsub.s32 0, %v156
    %v158 = vrot.slane %v154, %v157
    %vm159 = vcmp.eq.s32.totalorder %v132, %v158
    %v160 = vsel %vm159, 1, 0
    %v161 = vcvt.s32.f32 %v160
    %v162 = vld [vmem:[%s0] sm:$0xff]
    %v163 = vld [vmem:[%s0 + $0x8] sm:$0xff]
    %v164 = vld [vmem:[%s7] sm:$0xff]
    %v165 = vld [vmem:[%s8] sm:$0x1]
    %v167 = vlaneseq
    %v168 = vshrl.u32 %v167, 7
    %v169 = vsub.s32 0, %v168
    %v170 = vrot.slane %v165, %v169
    %vm172 = vcmask 64512
    %v174 = vsel %vm172, %v162, 0
    %v177 = vsel %vm172, %v163, 0
    %179 = vmatprep.subr.mxu0 0.0
    %180 = vmatpush1.msra.mxu0 0.0
    %181 = vmatprep.subr.mxu0 0.0
    %182 = vmatpush1.msra.mxu0 0.0
    %183 = vmatprep.subr.mxu0 0.0
    %184 = vmatpush1.msra.mxu0 0.0
    %185 = vmatprep.subr.mxu0 0.0
    %186 = vmatpush1.msra.mxu0 0.0
    %187 = vmatprep.subr.mxu0 0.0
    %188 = vmatpush1.msra.mxu0 0.0
    %189 = vmatprep.subr.mxu0 0.0
    %190 = vmatpush1.msra.mxu0 0.0
    %191 = vmatprep.subr.mxu0 0.0
    %192 = vmatpush1.msra.mxu0 0.0
    %193 = vmatprep.subr.mxu0 0.0
    %194 = vmatpush1.msra.mxu0 0.0
    %195 = vmatprep.subr.mxu0 0.0
    %196 = vmatpush1.msra.mxu0 0.0
    %197 = vmatprep.subr.mxu0 0.0
    %198 = vmatpush1.msra.mxu0 0.0
    %199 = vmatprep.subr.mxu0 0.0
    %200 = vmatpush1.msra.mxu0 0.0
    %201 = vmatprep.subr.mxu0 0.0
    %202 = vmatpush1.msra.mxu0 0.0
    %203 = vmatprep.subr.mxu0 0.0
    %204 = vmatpush1.msra.mxu0 0.0
    %205 = vmatprep.subr.mxu0 0.0
    %206 = vmatpush1.msra.mxu0 0.0
    %207 = vmatprep.subr.mxu0 0.0
    %208 = vmatpush1.msra.mxu0 0.0
    %209 = vmatprep.subr.mxu0 0.0
    %210 = vmatpush1.msra.mxu0 %v164
    %211 = vmatprep.subr.mxu0 0.0
    %212 = vmatpush2.msra.mxu0 0.0
    %213 = vmatprep.subr.mxu0 0.0
    %214 = vmatpush2.msra.mxu0 0.0
    %215 = vmatprep.subr.mxu0 0.0
    %216 = vmatpush2.msra.mxu0 0.0
    %217 = vmatprep.subr.mxu0 0.0
    %218 = vmatpush2.msra.mxu0 0.0
    %219 = vmatprep.subr.mxu0 0.0
    %220 = vmatpush2.msra.mxu0 0.0
    %221 = vmatprep.subr.mxu0 0.0
    %222 = vmatpush2.msra.mxu0 0.0
    %223 = vmatprep.subr.mxu0 0.0
    %224 = vmatpush2.msra.mxu0 0.0
    %225 = vmatprep.subr.mxu0 0.0
    %226 = vmatpush2.msra.mxu0 0.0
    %227 = vmatprep.subr.mxu0 0.0
    %228 = vmatpush2.msra.mxu0 0.0
    %229 = vmatprep.subr.mxu0 0.0
    %230 = vmatpush2.msra.mxu0 0.0
    %231 = vmatprep.subr.mxu0 0.0
    %232 = vmatpush2.msra.mxu0 0.0
    %233 = vmatprep.subr.mxu0 0.0
    %234 = vmatpush2.msra.mxu0 0.0
    %235 = vmatprep.subr.mxu0 0.0
    %236 = vmatpush2.msra.mxu0 0.0
    %237 = vmatprep.subr.mxu0 0.0
    %238 = vmatpush2.msra.mxu0 0.0
    %239 = vmatprep.subr.mxu0 0.0
    %240 = vmatpush2.msra.mxu0 0.0
    %241 = vmatprep.subr.mxu0 0.0
    %242 = vmatpush2.msra.mxu0 0.0
    %243 = vmatprep.mubr.f32.mxu0 0.0
    %244 = vmatmul.mubr.f32.gmra.mxu0 %v174
    %v245 = vpop.f32.mrf.mxu0
    %v246 = vadd.f32 %v170, %v245
    %v247 = vpop.f32.mrf.mxu0
    %248 = vmatprep.mubr.f32.mxu0 0.0
    %249 = vmatmul.mubr.f32.gmra.mxu0 %v177
    %v250 = vpop.f32.mrf.mxu0
    %v251 = vadd.f32 %v170, %v250
    %v252 = vpop.f32.mrf.mxu0
    %253 = vdwg.mxu0
    %v254 = vld [vmem:[%s9] sm:$0xff]
    %v255 = vld [vmem:[%s9 + $0x8] sm:$0xff]
    %v256 = vld [vmem:[%s9 + $0x10] sm:$0xff]
    %v257 = vld [vmem:[%s9 + $0x18] sm:$0xff]
    %vm258 = vcmask 261120
    %v260 = vsel %vm258, %v246, 0
    %v263 = vsel %vm258, %v251, 0
    %265 = vmatprep.subr.mxu0 0.0
    %266 = vmatpush1.msra.mxu0 0.0
    %267 = vmatprep.subr.mxu0 0.0
    %268 = vmatpush1.msra.mxu0 0.0
    %269 = vmatprep.subr.mxu0 0.0
    %270 = vmatpush1.msra.mxu0 0.0
    %271 = vmatprep.subr.mxu0 0.0
    %272 = vmatpush1.msra.mxu0 0.0
    %273 = vmatprep.subr.mxu0 0.0
    %274 = vmatpush1.msra.mxu0 0.0
    %275 = vmatprep.subr.mxu0 0.0
    %276 = vmatpush1.msra.mxu0 0.0
    %277 = vmatprep.subr.mxu0 0.0
    %278 = vmatpush1.msra.mxu0 0.0
    %279 = vmatprep.subr.mxu0 0.0
    %280 = vmatpush1.msra.mxu0 0.0
    %281 = vmatprep.subr.mxu0 0.0
    %282 = vmatpush1.msra.mxu0 0.0
    %283 = vmatprep.subr.mxu0 0.0
    %284 = vmatpush1.msra.mxu0 0.0
    %285 = vmatprep.subr.mxu0 0.0
    %286 = vmatpush1.msra.mxu0 0.0
    %287 = vmatprep.subr.mxu0 0.0
    %288 = vmatpush1.msra.mxu0 0.0
    %289 = vmatprep.subr.mxu0 0.0
    %290 = vmatpush1.msra.mxu0 %v257
    %291 = vmatprep.subr.mxu0 0.0
    %292 = vmatpush1.msra.mxu0 %v256
    %293 = vmatprep.subr.mxu0 0.0
    %294 = vmatpush1.msra.mxu0 %v255
    %295 = vmatprep.subr.mxu0 0.0
    %296 = vmatpush1.msra.mxu0 %v254
    %297 = vmatprep.subr.mxu0 0.0
    %298 = vmatpush2.msra.mxu0 0.0
    %299 = vmatprep.subr.mxu0 0.0
    %300 = vmatpush2.msra.mxu0 0.0
    %301 = vmatprep.subr.mxu0 0.0
    %302 = vmatpush2.msra.mxu0 0.0
    %303 = vmatprep.subr.mxu0 0.0
    %304 = vmatpush2.msra.mxu0 0.0
    %305 = vmatprep.subr.mxu0 0.0
    %306 = vmatpush2.msra.mxu0 0.0
    %307 = vmatprep.subr.mxu0 0.0
    %308 = vmatpush2.msra.mxu0 0.0
    %309 = vmatprep.subr.mxu0 0.0
    %310 = vmatpush2.msra.mxu0 0.0
    %311 = vmatprep.subr.mxu0 0.0
    %312 = vmatpush2.msra.mxu0 0.0
    %313 = vmatprep.subr.mxu0 0.0
    %314 = vmatpush2.msra.mxu0 0.0
    %315 = vmatprep.subr.mxu0 0.0
    %316 = vmatpush2.msra.mxu0 0.0
    %317 = vmatprep.subr.mxu0 0.0
    %318 = vmatpush2.msra.mxu0 0.0
    %319 = vmatprep.subr.mxu0 0.0
    %320 = vmatpush2.msra.mxu0 0.0
    %321 = vmatprep.subr.mxu0 0.0
    %322 = vmatpush2.msra.mxu0 0.0
    %323 = vmatprep.subr.mxu0 0.0
    %324 = vmatpush2.msra.mxu0 0.0
    %325 = vmatprep.subr.mxu0 0.0
    %326 = vmatpush2.msra.mxu0 0.0
    %327 = vmatprep.subr.mxu0 0.0
    %328 = vmatpush2.msra.mxu0 0.0
    %329 = vmatprep.mubr.f32.mxu0 0.0
    %330 = vmatmul.mubr.f32.gmra.mxu0 %v260
    %v331 = vpop.f32.mrf.mxu0
    %v332 = vadd.f32 0.0, %v331
    %v333 = vpop.f32.mrf.mxu0
    %334 = vmatprep.mubr.f32.mxu0 0.0
    %335 = vmatmul.mubr.f32.gmra.mxu0 %v263
    %v336 = vpop.f32.mrf.mxu0
    %v337 = vadd.f32 0.0, %v336
    %v338 = vpop.f32.mrf.mxu0
    %339 = vdwg.mxu0
    %v340 = vld [vmem:[%s10] sm:$0xff]
    %v341 = vld [vmem:[%s10 + $0x8] sm:$0xff]
    %v342 = vld [vmem:[%s10 + $0x10] sm:$0xff]
    %v343 = vld [vmem:[%s10 + $0x18] sm:$0xff]
    %344 = vmatprep.subr.mxu0 0.0
    %345 = vmatpush1.msra.mxu0 0.0
    %346 = vmatprep.subr.mxu0 0.0
    %347 = vmatpush1.msra.mxu0 0.0
    %348 = vmatprep.subr.mxu0 0.0
    %349 = vmatpush1.msra.mxu0 0.0
    %350 = vmatprep.subr.mxu0 0.0
    %351 = vmatpush1.msra.mxu0 0.0
    %352 = vmatprep.subr.mxu0 0.0
    %353 = vmatpush1.msra.mxu0 0.0
    %354 = vmatprep.subr.mxu0 0.0
    %355 = vmatpush1.msra.mxu0 0.0
    %356 = vmatprep.subr.mxu0 0.0
    %357 = vmatpush1.msra.mxu0 0.0
    %358 = vmatprep.subr.mxu0 0.0
    %359 = vmatpush1.msra.mxu0 0.0
    %360 = vmatprep.subr.mxu0 0.0
    %361 = vmatpush1.msra.mxu0 0.0
    %362 = vmatprep.subr.mxu0 0.0
    %363 = vmatpush1.msra.mxu0 0.0
    %364 = vmatprep.subr.mxu0 0.0
    %365 = vmatpush1.msra.mxu0 0.0
    %366 = vmatprep.subr.mxu0 0.0
    %367 = vmatpush1.msra.mxu0 0.0
    %368 = vmatprep.subr.mxu0 0.0
    %369 = vmatpush1.msra.mxu0 %v343
    %370 = vmatprep.subr.mxu0 0.0
    %371 = vmatpush1.msra.mxu0 %v342
    %372 = vmatprep.subr.mxu0 0.0
    %373 = vmatpush1.msra.mxu0 %v341
    %374 = vmatprep.subr.mxu0 0.0
    %375 = vmatpush1.msra.mxu0 %v340
    %376 = vmatprep.subr.mxu0 0.0
    %377 = vmatpush2.msra.mxu0 0.0
    %378 = vmatprep.subr.mxu0 0.0
    %379 = vmatpush2.msra.mxu0 0.0
    %380 = vmatprep.subr.mxu0 0.0
    %381 = vmatpush2.msra.mxu0 0.0
    %382 = vmatprep.subr.mxu0 0.0
    %383 = vmatpush2.msra.mxu0 0.0
    %384 = vmatprep.subr.mxu0 0.0
    %385 = vmatpush2.msra.mxu0 0.0
    %386 = vmatprep.subr.mxu0 0.0
    %387 = vmatpush2.msra.mxu0 0.0
    %388 = vmatprep.subr.mxu0 0.0
    %389 = vmatpush2.msra.mxu0 0.0
    %390 = vmatprep.subr.mxu0 0.0
    %391 = vmatpush2.msra.mxu0 0.0
    %392 = vmatprep.subr.mxu0 0.0
    %393 = vmatpush2.msra.mxu0 0.0
    %394 = vmatprep.subr.mxu0 0.0
    %395 = vmatpush2.msra.mxu0 0.0
    %396 = vmatprep.subr.mxu0 0.0
    %397 = vmatpush2.msra.mxu0 0.0
    %398 = vmatprep.subr.mxu0 0.0
    %399 = vmatpush2.msra.mxu0 0.0
    %400 = vmatprep.subr.mxu0 0.0
    %401 = vmatpush2.msra.mxu0 0.0
    %402 = vmatprep.subr.mxu0 0.0
    %403 = vmatpush2.msra.mxu0 0.0
    %404 = vmatprep.subr.mxu0 0.0
    %405 = vmatpush2.msra.mxu0 0.0
    %406 = vmatprep.subr.mxu0 0.0
    %407 = vmatpush2.msra.mxu0 0.0
    %408 = vmatprep.mubr.f32.mxu0 0.0
    %409 = vmatmul.mubr.f32.gmra.mxu0 %v260
    %v410 = vpop.f32.mrf.mxu0
    %v411 = vadd.f32 0.0, %v410
    %v412 = vpop.f32.mrf.mxu0
    %413 = vmatprep.mubr.f32.mxu0 0.0
    %414 = vmatmul.mubr.f32.gmra.mxu0 %v263
    %v415 = vpop.f32.mrf.mxu0
    %v416 = vadd.f32 0.0, %v415
    %v417 = vpop.f32.mrf.mxu0
    %418 = vdwg.mxu0
    %vm419 = vcmask 130048
    %v421 = vsel %vm419, %v127, 0
    %v424 = vsel %vm419, %v128, 0
    %v427 = vsel %vm419, %v129, 0
    %v430 = vsel %vm419, %v130, 0
    %432 = vmatprep.subr.mxu0 0.0
    %433 = vmatpush1.msra.mxu0 0.0
    %434 = vmatprep.subr.mxu0 0.0
    %435 = vmatpush1.msra.mxu0 0.0
    %436 = vmatprep.subr.mxu0 0.0
    %437 = vmatpush1.msra.mxu0 0.0
    %438 = vmatprep.subr.mxu0 0.0
    %439 = vmatpush1.msra.mxu0 0.0
    %440 = vmatprep.subr.mxu0 0.0
    %441 = vmatpush1.msra.mxu0 0.0
    %442 = vmatprep.subr.mxu0 0.0
    %443 = vmatpush1.msra.mxu0 0.0
    %444 = vmatprep.subr.mxu0 0.0
    %445 = vmatpush1.msra.mxu0 0.0
    %446 = vmatprep.subr.mxu0 0.0
    %447 = vmatpush1.msra.mxu0 0.0
    %448 = vmatprep.subr.mxu0 0.0
    %449 = vmatpush1.msra.mxu0 0.0
    %450 = vmatprep.subr.mxu0 0.0
    %451 = vmatpush1.msra.mxu0 0.0
    %452 = vmatprep.subr.mxu0 0.0
    %453 = vmatpush1.msra.mxu0 0.0
    %454 = vmatprep.subr.mxu0 0.0
    %455 = vmatpush1.msra.mxu0 0.0
    %456 = vmatprep.subr.mxu0 0.0
    %457 = vmatpush1.msra.mxu0 0.0
    %458 = vmatprep.subr.mxu0 0.0
    %459 = vmatpush1.msra.mxu0 0.0
    %460 = vmatprep.subr.mxu0 0.0
    %461 = vmatpush1.msra.mxu0 %v416
    %462 = vmatprep.subr.mxu0 0.0
    %463 = vmatpush1.msra.mxu0 %v411
    %464 = vmatprep.subr.mxu0 0.0
    %465 = vmatpush2.msra.mxu0 0.0
    %466 = vmatprep.subr.mxu0 0.0
    %467 = vmatpush2.msra.mxu0 0.0
    %468 = vmatprep.subr.mxu0 0.0
    %469 = vmatpush2.msra.mxu0 0.0
    %470 = vmatprep.subr.mxu0 0.0
    %471 = vmatpush2.msra.mxu0 0.0
    %472 = vmatprep.subr.mxu0 0.0
    %473 = vmatpush2.msra.mxu0 0.0
    %474 = vmatprep.subr.mxu0 0.0
    %475 = vmatpush2.msra.mxu0 0.0
    %476 = vmatprep.subr.mxu0 0.0
    %477 = vmatpush2.msra.mxu0 0.0
    %478 = vmatprep.subr.mxu0 0.0
    %479 = vmatpush2.msra.mxu0 0.0
    %480 = vmatprep.subr.mxu0 0.0
    %481 = vmatpush2.msra.mxu0 0.0
    %482 = vmatprep.subr.mxu0 0.0
    %483 = vmatpush2.msra.mxu0 0.0
    %484 = vmatprep.subr.mxu0 0.0
    %485 = vmatpush2.msra.mxu0 0.0
    %486 = vmatprep.subr.mxu0 0.0
    %487 = vmatpush2.msra.mxu0 0.0
    %488 = vmatprep.subr.mxu0 0.0
    %489 = vmatpush2.msra.mxu0 0.0
    %490 = vmatprep.subr.mxu0 0.0
    %491 = vmatpush2.msra.mxu0 0.0
    %492 = vmatprep.subr.mxu0 0.0
    %493 = vmatpush2.msra.mxu0 0.0
    %494 = vmatprep.subr.mxu0 0.0
    %495 = vmatpush2.msra.mxu0 0.0
    %496 = vmatprep.mubr.f32.mxu0 0.0
    %497 = vmatmul.mubr.f32.gmra.mxu0 %v421
    %v498 = vpop.f32.mrf.mxu0
    %v499 = vadd.f32 0.0, %v498
    %v500 = vpop.f32.mrf.mxu0
    %501 = vmatprep.mubr.f32.mxu0 0.0
    %502 = vmatmul.mubr.f32.gmra.mxu0 %v424
    %v503 = vpop.f32.mrf.mxu0
    %v504 = vadd.f32 0.0, %v503
    %v505 = vpop.f32.mrf.mxu0
    %506 = vmatprep.mubr.f32.mxu0 0.0
    %507 = vmatmul.mubr.f32.gmra.mxu0 %v427
    %v508 = vpop.f32.mrf.mxu0
    %v509 = vadd.f32 0.0, %v508
    %v510 = vpop.f32.mrf.mxu0
    %511 = vmatprep.mubr.f32.mxu0 0.0
    %512 = vmatmul.mubr.f32.gmra.mxu0 %v430
    %v513 = vpop.f32.mrf.mxu0
    %v514 = vadd.f32 0.0, %v513
    %v515 = vpop.f32.mrf.mxu0
    %516 = vdwg.mxu0
    %v518 = vsel %vm419, %v99, 0
    %v521 = vsel %vm419, %v100, 0
    %v524 = vsel %vm419, %v101, 0
    %v527 = vsel %vm419, %v102, 0
    %529 = vmatprep.subr.mxu0 0.0
    %530 = vmatpush1.msra.mxu0 0.0
    %531 = vmatprep.subr.mxu0 0.0
    %532 = vmatpush1.msra.mxu0 0.0
    %533 = vmatprep.subr.mxu0 0.0
    %534 = vmatpush1.msra.mxu0 0.0
    %535 = vmatprep.subr.mxu0 0.0
    %536 = vmatpush1.msra.mxu0 0.0
    %537 = vmatprep.subr.mxu0 0.0
    %538 = vmatpush1.msra.mxu0 0.0
    %539 = vmatprep.subr.mxu0 0.0
    %540 = vmatpush1.msra.mxu0 0.0
    %541 = vmatprep.subr.mxu0 0.0
    %542 = vmatpush1.msra.mxu0 0.0
    %543 = vmatprep.subr.mxu0 0.0
    %544 = vmatpush1.msra.mxu0 0.0
    %545 = vmatprep.subr.mxu0 0.0
    %546 = vmatpush1.msra.mxu0 0.0
    %547 = vmatprep.subr.mxu0 0.0
    %548 = vmatpush1.msra.mxu0 0.0
    %549 = vmatprep.subr.mxu0 0.0
    %550 = vmatpush1.msra.mxu0 0.0
    %551 = vmatprep.subr.mxu0 0.0
    %552 = vmatpush1.msra.mxu0 0.0
    %553 = vmatprep.subr.mxu0 0.0
    %554 = vmatpush1.msra.mxu0 0.0
    %555 = vmatprep.subr.mxu0 0.0
    %556 = vmatpush1.msra.mxu0 0.0
    %557 = vmatprep.subr.mxu0 0.0
    %558 = vmatpush1.msra.mxu0 %v337
    %559 = vmatprep.subr.mxu0 0.0
    %560 = vmatpush1.msra.mxu0 %v332
    %561 = vmatprep.subr.mxu0 0.0
    %562 = vmatpush2.msra.mxu0 0.0
    %563 = vmatprep.subr.mxu0 0.0
    %564 = vmatpush2.msra.mxu0 0.0
    %565 = vmatprep.subr.mxu0 0.0
    %566 = vmatpush2.msra.mxu0 0.0
    %567 = vmatprep.subr.mxu0 0.0
    %568 = vmatpush2.msra.mxu0 0.0
    %569 = vmatprep.subr.mxu0 0.0
    %570 = vmatpush2.msra.mxu0 0.0
    %571 = vmatprep.subr.mxu0 0.0
    %572 = vmatpush2.msra.mxu0 0.0
    %573 = vmatprep.subr.mxu0 0.0
    %574 = vmatpush2.msra.mxu0 0.0
    %575 = vmatprep.subr.mxu0 0.0
    %576 = vmatpush2.msra.mxu0 0.0
    %577 = vmatprep.subr.mxu0 0.0
    %578 = vmatpush2.msra.mxu0 0.0
    %579 = vmatprep.subr.mxu0 0.0
    %580 = vmatpush2.msra.mxu0 0.0
    %581 = vmatprep.subr.mxu0 0.0
    %582 = vmatpush2.msra.mxu0 0.0
    %583 = vmatprep.subr.mxu0 0.0
    %584 = vmatpush2.msra.mxu0 0.0
    %585 = vmatprep.subr.mxu0 0.0
    %586 = vmatpush2.msra.mxu0 0.0
    %587 = vmatprep.subr.mxu0 0.0
    %588 = vmatpush2.msra.mxu0 0.0
    %589 = vmatprep.subr.mxu0 0.0
    %590 = vmatpush2.msra.mxu0 0.0
    %591 = vmatprep.subr.mxu0 0.0
    %592 = vmatpush2.msra.mxu0 0.0
    %593 = vmatprep.mubr.f32.mxu0 0.0
    %594 = vmatmul.mubr.f32.gmra.mxu0 %v518
    %v595 = vpop.f32.mrf.mxu0
    %v596 = vadd.f32 %v499, %v595
    %v597 = vpop.f32.mrf.mxu0
    %598 = vmatprep.mubr.f32.mxu0 0.0
    %599 = vmatmul.mubr.f32.gmra.mxu0 %v521
    %v600 = vpop.f32.mrf.mxu0
    %v601 = vadd.f32 %v504, %v600
    %v602 = vpop.f32.mrf.mxu0
    %603 = vmatprep.mubr.f32.mxu0 0.0
    %604 = vmatmul.mubr.f32.gmra.mxu0 %v524
    %v605 = vpop.f32.mrf.mxu0
    %v606 = vadd.f32 %v509, %v605
    %v607 = vpop.f32.mrf.mxu0
    %608 = vmatprep.mubr.f32.mxu0 0.0
    %609 = vmatmul.mubr.f32.gmra.mxu0 %v527
    %v610 = vpop.f32.mrf.mxu0
    %v611 = vadd.f32 %v514, %v610
    %v612 = vpop.f32.mrf.mxu0
    %613 = vdwg.mxu0
    %v614 = vld [vmem:[%s11] sm:$0xff]
    %v615 = vld [vmem:[%s11 + $0x8] sm:$0xff]
    %v617 = vsel %vm419, %v69, 0
    %v620 = vsel %vm419, %v70, 0
    %v623 = vsel %vm419, %v71, 0
    %v626 = vsel %vm419, %v72, 0
    %628 = vmatprep.subr.mxu0 0.0
    %629 = vmatpush1.msra.mxu0 0.0
    %630 = vmatprep.subr.mxu0 0.0
    %631 = vmatpush1.msra.mxu0 0.0
    %632 = vmatprep.subr.mxu0 0.0
    %633 = vmatpush1.msra.mxu0 0.0
    %634 = vmatprep.subr.mxu0 0.0
    %635 = vmatpush1.msra.mxu0 0.0
    %636 = vmatprep.subr.mxu0 0.0
    %637 = vmatpush1.msra.mxu0 0.0
    %638 = vmatprep.subr.mxu0 0.0
    %639 = vmatpush1.msra.mxu0 0.0
    %640 = vmatprep.subr.mxu0 0.0
    %641 = vmatpush1.msra.mxu0 0.0
    %642 = vmatprep.subr.mxu0 0.0
    %643 = vmatpush1.msra.mxu0 0.0
    %644 = vmatprep.subr.mxu0 0.0
    %645 = vmatpush1.msra.mxu0 0.0
    %646 = vmatprep.subr.mxu0 0.0
    %647 = vmatpush1.msra.mxu0 0.0
    %648 = vmatprep.subr.mxu0 0.0
    %649 = vmatpush1.msra.mxu0 0.0
    %650 = vmatprep.subr.mxu0 0.0
    %651 = vmatpush1.msra.mxu0 0.0
    %652 = vmatprep.subr.mxu0 0.0
    %653 = vmatpush1.msra.mxu0 0.0
    %654 = vmatprep.subr.mxu0 0.0
    %655 = vmatpush1.msra.mxu0 0.0
    %656 = vmatprep.subr.mxu0 0.0
    %657 = vmatpush1.msra.mxu0 %v615
    %658 = vmatprep.subr.mxu0 0.0
    %659 = vmatpush1.msra.mxu0 %v614
    %660 = vmatprep.subr.mxu0 0.0
    %661 = vmatpush2.msra.mxu0 0.0
    %662 = vmatprep.subr.mxu0 0.0
    %663 = vmatpush2.msra.mxu0 0.0
    %664 = vmatprep.subr.mxu0 0.0
    %665 = vmatpush2.msra.mxu0 0.0
    %666 = vmatprep.subr.mxu0 0.0
    %667 = vmatpush2.msra.mxu0 0.0
    %668 = vmatprep.subr.mxu0 0.0
    %669 = vmatpush2.msra.mxu0 0.0
    %670 = vmatprep.subr.mxu0 0.0
    %671 = vmatpush2.msra.mxu0 0.0
    %672 = vmatprep.subr.mxu0 0.0
    %673 = vmatpush2.msra.mxu0 0.0
    %674 = vmatprep.subr.mxu0 0.0
    %675 = vmatpush2.msra.mxu0 0.0
    %676 = vmatprep.subr.mxu0 0.0
    %677 = vmatpush2.msra.mxu0 0.0
    %678 = vmatprep.subr.mxu0 0.0
    %679 = vmatpush2.msra.mxu0 0.0
    %680 = vmatprep.subr.mxu0 0.0
    %681 = vmatpush2.msra.mxu0 0.0
    %682 = vmatprep.subr.mxu0 0.0
    %683 = vmatpush2.msra.mxu0 0.0
    %684 = vmatprep.subr.mxu0 0.0
    %685 = vmatpush2.msra.mxu0 0.0
    %686 = vmatprep.subr.mxu0 0.0
    %687 = vmatpush2.msra.mxu0 0.0
    %688 = vmatprep.subr.mxu0 0.0
    %689 = vmatpush2.msra.mxu0 0.0
    %690 = vmatprep.subr.mxu0 0.0
    %691 = vmatpush2.msra.mxu0 0.0
    %692 = vmatprep.mubr.f32.mxu0 0.0
    %693 = vmatmul.mubr.f32.gmra.mxu0 %v617
    %v694 = vpop.f32.mrf.mxu0
    %v695 = vadd.f32 0.0, %v694
    %v696 = vpop.f32.mrf.mxu0
    %697 = vmatprep.mubr.f32.mxu0 0.0
    %698 = vmatmul.mubr.f32.gmra.mxu0 %v620
    %v699 = vpop.f32.mrf.mxu0
    %v700 = vadd.f32 0.0, %v699
    %v701 = vpop.f32.mrf.mxu0
    %702 = vmatprep.mubr.f32.mxu0 0.0
    %703 = vmatmul.mubr.f32.gmra.mxu0 %v623
    %v704 = vpop.f32.mrf.mxu0
    %v705 = vadd.f32 0.0, %v704
    %v706 = vpop.f32.mrf.mxu0
    %707 = vmatprep.mubr.f32.mxu0 0.0
    %708 = vmatmul.mubr.f32.gmra.mxu0 %v626
    %v709 = vpop.f32.mrf.mxu0
    %v710 = vadd.f32 0.0, %v709
    %v711 = vpop.f32.mrf.mxu0
    %712 = vdwg.mxu0
    %v713 = vadd.f32 %v596, %v695
    %v714 = vadd.f32 %v601, %v700
    %v715 = vadd.f32 %v606, %v705
    %v716 = vadd.f32 %v611, %v710
    %v717 = vld [vmem:[%s12] sm:$0x1]
    %v719 = vlaneseq
    %v720 = vshrl.u32 %v719, 7
    %v721 = vsub.s32 0, %v720
    %v722 = vrot.slane %v717, %v721
    %v724 = vadd.f32 %v713, %v722
    %v725 = vadd.f32 %v714, %v722
    %v726 = vadd.f32 %v715, %v722
    %v727 = vadd.f32 %v716, %v722
    %v728 = vmax.f32 %v724, 0.0
    %v729 = vmax.f32 %v725, 0.0
    %v730 = vmax.f32 %v726, 0.0
    %v731 = vmax.f32 %v727, 0.0
    %v732 = vld [vmem:[%s13] sm:$0xff]
    %v733 = vld [vmem:[%s13 + $0x8] sm:$0xff]
    %v734 = vld [vmem:[%s13 + $0x10] sm:$0xff]
    %v735 = vld [vmem:[%s13 + $0x18] sm:$0xff]
    %v736 = vld [vmem:[%s14] sm:$0x1]
    %v738 = vlaneseq
    %v739 = vshrl.u32 %v738, 7
    %v740 = vsub.s32 0, %v739
    %v741 = vrot.slane %v736, %v740
    %v744 = vsel %vm258, %v728, 0
    %v747 = vsel %vm258, %v729, 0
    %v750 = vsel %vm258, %v730, 0
    %v753 = vsel %vm258, %v731, 0
    %755 = vmatprep.subr.mxu0 0.0
    %756 = vmatpush1.msra.mxu0 0.0
    %757 = vmatprep.subr.mxu0 0.0
    %758 = vmatpush1.msra.mxu0 0.0
    %759 = vmatprep.subr.mxu0 0.0
    %760 = vmatpush1.msra.mxu0 0.0
    %761 = vmatprep.subr.mxu0 0.0
    %762 = vmatpush1.msra.mxu0 0.0
    %763 = vmatprep.subr.mxu0 0.0
    %764 = vmatpush1.msra.mxu0 0.0
    %765 = vmatprep.subr.mxu0 0.0
    %766 = vmatpush1.msra.mxu0 0.0
    %767 = vmatprep.subr.mxu0 0.0
    %768 = vmatpush1.msra.mxu0 0.0
    %769 = vmatprep.subr.mxu0 0.0
    %770 = vmatpush1.msra.mxu0 0.0
    %771 = vmatprep.subr.mxu0 0.0
    %772 = vmatpush1.msra.mxu0 0.0
    %773 = vmatprep.subr.mxu0 0.0
    %774 = vmatpush1.msra.mxu0 0.0
    %775 = vmatprep.subr.mxu0 0.0
    %776 = vmatpush1.msra.mxu0 0.0
    %777 = vmatprep.subr.mxu0 0.0
    %778 = vmatpush1.msra.mxu0 0.0
    %779 = vmatprep.subr.mxu0 0.0
    %780 = vmatpush1.msra.mxu0 %v735
    %781 = vmatprep.subr.mxu0 0.0
    %782 = vmatpush1.msra.mxu0 %v734
    %783 = vmatprep.subr.mxu0 0.0
    %784 = vmatpush1.msra.mxu0 %v733
    %785 = vmatprep.subr.mxu0 0.0
    %786 = vmatpush1.msra.mxu0 %v732
    %787 = vmatprep.subr.mxu0 0.0
    %788 = vmatpush2.msra.mxu0 0.0
    %789 = vmatprep.subr.mxu0 0.0
    %790 = vmatpush2.msra.mxu0 0.0
    %791 = vmatprep.subr.mxu0 0.0
    %792 = vmatpush2.msra.mxu0 0.0
    %793 = vmatprep.subr.mxu0 0.0
    %794 = vmatpush2.msra.mxu0 0.0
    %795 = vmatprep.subr.mxu0 0.0
    %796 = vmatpush2.msra.mxu0 0.0
    %797 = vmatprep.subr.mxu0 0.0
    %798 = vmatpush2.msra.mxu0 0.0
    %799 = vmatprep.subr.mxu0 0.0
    %800 = vmatpush2.msra.mxu0 0.0
    %801 = vmatprep.subr.mxu0 0.0
    %802 = vmatpush2.msra.mxu0 0.0
    %803 = vmatprep.subr.mxu0 0.0
    %804 = vmatpush2.msra.mxu0 0.0
    %805 = vmatprep.subr.mxu0 0.0
    %806 = vmatpush2.msra.mxu0 0.0
    %807 = vmatprep.subr.mxu0 0.0
    %808 = vmatpush2.msra.mxu0 0.0
    %809 = vmatprep.subr.mxu0 0.0
    %810 = vmatpush2.msra.mxu0 0.0
    %811 = vmatprep.subr.mxu0 0.0
    %812 = vmatpush2.msra.mxu0 0.0
    %813 = vmatprep.subr.mxu0 0.0
    %814 = vmatpush2.msra.mxu0 0.0
    %815 = vmatprep.subr.mxu0 0.0
    %816 = vmatpush2.msra.mxu0 0.0
    %817 = vmatprep.subr.mxu0 0.0
    %818 = vmatpush2.msra.mxu0 0.0
    %819 = vmatprep.mubr.f32.mxu0 0.0
    %820 = vmatmul.mubr.f32.gmra.mxu0 %v744
    %v821 = vpop.f32.mrf.mxu0
    %v822 = vadd.f32 %v741, %v821
    %v823 = vpop.f32.mrf.mxu0
    %824 = vmatprep.mubr.f32.mxu0 0.0
    %825 = vmatmul.mubr.f32.gmra.mxu0 %v747
    %v826 = vpop.f32.mrf.mxu0
    %v827 = vadd.f32 %v741, %v826
    %v828 = vpop.f32.mrf.mxu0
    %829 = vmatprep.mubr.f32.mxu0 0.0
    %830 = vmatmul.mubr.f32.gmra.mxu0 %v750
    %v831 = vpop.f32.mrf.mxu0
    %v832 = vadd.f32 %v741, %v831
    %v833 = vpop.f32.mrf.mxu0
    %834 = vmatprep.mubr.f32.mxu0 0.0
    %835 = vmatmul.mubr.f32.gmra.mxu0 %v753
    %v836 = vpop.f32.mrf.mxu0
    %v837 = vadd.f32 %v741, %v836
    %v838 = vpop.f32.mrf.mxu0
    %839 = vdwg.mxu0
    %v841 = vsel %vm258, %v152, 0
    %v844 = vsel %vm258, %v153, 0
    %846 = vmatprep.subr.mxu0 0.0
    %847 = vmatpush1.msra.mxu0 0.0
    %848 = vmatprep.subr.mxu0 0.0
    %849 = vmatpush1.msra.mxu0 0.0
    %850 = vmatprep.subr.mxu0 0.0
    %851 = vmatpush1.msra.mxu0 0.0
    %852 = vmatprep.subr.mxu0 0.0
    %853 = vmatpush1.msra.mxu0 0.0
    %854 = vmatprep.subr.mxu0 0.0
    %855 = vmatpush1.msra.mxu0 0.0
    %856 = vmatprep.subr.mxu0 0.0
    %857 = vmatpush1.msra.mxu0 0.0
    %858 = vmatprep.subr.mxu0 0.0
    %859 = vmatpush1.msra.mxu0 0.0
    %860 = vmatprep.subr.mxu0 0.0
    %861 = vmatpush1.msra.mxu0 0.0
    %862 = vmatprep.subr.mxu0 0.0
    %863 = vmatpush1.msra.mxu0 0.0
    %864 = vmatprep.subr.mxu0 0.0
    %865 = vmatpush1.msra.mxu0 0.0
    %866 = vmatprep.subr.mxu0 0.0
    %867 = vmatpush1.msra.mxu0 0.0
    %868 = vmatprep.subr.mxu0 0.0
    %869 = vmatpush1.msra.mxu0 0.0
    %870 = vmatprep.subr.mxu0 0.0
    %871 = vmatpush1.msra.mxu0 %v837
    %872 = vmatprep.subr.mxu0 0.0
    %873 = vmatpush1.msra.mxu0 %v832
    %874 = vmatprep.subr.mxu0 0.0
    %875 = vmatpush1.msra.mxu0 %v827
    %876 = vmatprep.subr.mxu0 0.0
    %877 = vmatpush1.msra.mxu0 %v822
    %878 = vmatprep.subr.mxu0 0.0
    %879 = vmatpush2.msra.mxu0 0.0
    %880 = vmatprep.subr.mxu0 0.0
    %881 = vmatpush2.msra.mxu0 0.0
    %882 = vmatprep.subr.mxu0 0.0
    %883 = vmatpush2.msra.mxu0 0.0
    %884 = vmatprep.subr.mxu0 0.0
    %885 = vmatpush2.msra.mxu0 0.0
    %886 = vmatprep.subr.mxu0 0.0
    %887 = vmatpush2.msra.mxu0 0.0
    %888 = vmatprep.subr.mxu0 0.0
    %889 = vmatpush2.msra.mxu0 0.0
    %890 = vmatprep.subr.mxu0 0.0
    %891 = vmatpush2.msra.mxu0 0.0
    %892 = vmatprep.subr.mxu0 0.0
    %893 = vmatpush2.msra.mxu0 0.0
    %894 = vmatprep.subr.mxu0 0.0
    %895 = vmatpush2.msra.mxu0 0.0
    %896 = vmatprep.subr.mxu0 0.0
    %897 = vmatpush2.msra.mxu0 0.0
    %898 = vmatprep.subr.mxu0 0.0
    %899 = vmatpush2.msra.mxu0 0.0
    %900 = vmatprep.subr.mxu0 0.0
    %901 = vmatpush2.msra.mxu0 0.0
    %902 = vmatprep.subr.mxu0 0.0
    %903 = vmatpush2.msra.mxu0 0.0
    %904 = vmatprep.subr.mxu0 0.0
    %905 = vmatpush2.msra.mxu0 0.0
    %906 = vmatprep.subr.mxu0 0.0
    %907 = vmatpush2.msra.mxu0 0.0
    %908 = vmatprep.subr.mxu0 0.0
    %909 = vmatpush2.msra.mxu0 0.0
    %910 = vmatprep.mubr.f32.mxu0 0.0
    %911 = vmatmul.mubr.f32.gmra.mxu0 %v841
    %v912 = vpop.f32.mrf.mxu0
    %v913 = vadd.f32 0.0, %v912
    %v914 = vpop.f32.mrf.mxu0
    %915 = vmatprep.mubr.f32.mxu0 0.0
    %916 = vmatmul.mubr.f32.gmra.mxu0 %v844
    %v917 = vpop.f32.mrf.mxu0
    %v918 = vadd.f32 0.0, %v917
    %v919 = vpop.f32.mrf.mxu0
    %920 = vdwg.mxu0
    %v921 = vld [vmem:[%s15] sm:$0xff]
    %v922 = vld [vmem:[%s15 + $0x8] sm:$0xff]
    %v923 = vld [vmem:[%s15 + $0x10] sm:$0xff]
    %v924 = vld [vmem:[%s15 + $0x18] sm:$0xff]
    %v925 = vld [vmem:[%s16] sm:$0xff]
    %v926 = vld [vmem:[%s16 + $0x8] sm:$0xff]
    %v927 = vld [vmem:[%s16 + $0x10] sm:$0xff]
    %v928 = vld [vmem:[%s16 + $0x18] sm:$0xff]
    %v930 = vsel %vm258, %v913, 0
    %v933 = vsel %vm258, %v918, 0
    %935 = vmatprep.subr.mxu0 0.0
    %936 = vmatpush1.msra.mxu0 0.0
    %937 = vmatprep.subr.mxu0 0.0
    %938 = vmatpush1.msra.mxu0 0.0
    %939 = vmatprep.subr.mxu0 0.0
    %940 = vmatpush1.msra.mxu0 0.0
    %941 = vmatprep.subr.mxu0 0.0
    %942 = vmatpush1.msra.mxu0 0.0
    %943 = vmatprep.subr.mxu0 0.0
    %944 = vmatpush1.msra.mxu0 0.0
    %945 = vmatprep.subr.mxu0 0.0
    %946 = vmatpush1.msra.mxu0 0.0
    %947 = vmatprep.subr.mxu0 0.0
    %948 = vmatpush1.msra.mxu0 0.0
    %949 = vmatprep.subr.mxu0 0.0
    %950 = vmatpush1.msra.mxu0 0.0
    %951 = vmatprep.subr.mxu0 0.0
    %952 = vmatpush1.msra.mxu0 0.0
    %953 = vmatprep.subr.mxu0 0.0
    %954 = vmatpush1.msra.mxu0 0.0
    %955 = vmatprep.subr.mxu0 0.0
    %956 = vmatpush1.msra.mxu0 0.0
    %957 = vmatprep.subr.mxu0 0.0
    %958 = vmatpush1.msra.mxu0 0.0
    %959 = vmatprep.subr.mxu0 0.0
    %960 = vmatpush1.msra.mxu0 %v928
    %961 = vmatprep.subr.mxu0 0.0
    %962 = vmatpush1.msra.mxu0 %v927
    %963 = vmatprep.subr.mxu0 0.0
    %964 = vmatpush1.msra.mxu0 %v926
    %965 = vmatprep.subr.mxu0 0.0
    %966 = vmatpush1.msra.mxu0 %v925
    %967 = vmatprep.subr.mxu0 0.0
    %968 = vmatpush2.msra.mxu0 0.0
    %969 = vmatprep.subr.mxu0 0.0
    %970 = vmatpush2.msra.mxu0 0.0
    %971 = vmatprep.subr.mxu0 0.0
    %972 = vmatpush2.msra.mxu0 0.0
    %973 = vmatprep.subr.mxu0 0.0
    %974 = vmatpush2.msra.mxu0 0.0
    %975 = vmatprep.subr.mxu0 0.0
    %976 = vmatpush2.msra.mxu0 0.0
    %977 = vmatprep.subr.mxu0 0.0
    %978 = vmatpush2.msra.mxu0 0.0
    %979 = vmatprep.subr.mxu0 0.0
    %980 = vmatpush2.msra.mxu0 0.0
    %981 = vmatprep.subr.mxu0 0.0
    %982 = vmatpush2.msra.mxu0 0.0
    %983 = vmatprep.subr.mxu0 0.0
    %984 = vmatpush2.msra.mxu0 0.0
    %985 = vmatprep.subr.mxu0 0.0
    %986 = vmatpush2.msra.mxu0 0.0
    %987 = vmatprep.subr.mxu0 0.0
    %988 = vmatpush2.msra.mxu0 0.0
    %989 = vmatprep.subr.mxu0 0.0
    %990 = vmatpush2.msra.mxu0 0.0
    %991 = vmatprep.subr.mxu0 0.0
    %992 = vmatpush2.msra.mxu0 0.0
    %993 = vmatprep.subr.mxu0 0.0
    %994 = vmatpush2.msra.mxu0 0.0
    %995 = vmatprep.subr.mxu0 0.0
    %996 = vmatpush2.msra.mxu0 0.0
    %997 = vmatprep.subr.mxu0 0.0
    %998 = vmatpush2.msra.mxu0 0.0
    %999 = vmatprep.mubr.f32.mxu0 0.0
    %1000 = vmatmul.mubr.f32.gmra.mxu0 %v930
    %v1001 = vpop.f32.mrf.mxu0
    %v1002 = vadd.f32 0.0, %v1001
    %v1003 = vpop.f32.mrf.mxu0
    %1004 = vmatprep.mubr.f32.mxu0 0.0
    %1005 = vmatmul.mubr.f32.gmra.mxu0 %v933
    %v1006 = vpop.f32.mrf.mxu0
    %v1007 = vadd.f32 0.0, %v1006
    %v1008 = vpop.f32.mrf.mxu0
    %1009 = vdwg.mxu0
    %1010 = vmatprep.subr.mxu0 0.0
    %1011 = vmatpush1.msra.mxu0 0.0
    %1012 = vmatprep.subr.mxu0 0.0
    %1013 = vmatpush1.msra.mxu0 0.0
    %1014 = vmatprep.subr.mxu0 0.0
    %1015 = vmatpush1.msra.mxu0 0.0
    %1016 = vmatprep.subr.mxu0 0.0
    %1017 = vmatpush1.msra.mxu0 0.0
    %1018 = vmatprep.subr.mxu0 0.0
    %1019 = vmatpush1.msra.mxu0 0.0
    %1020 = vmatprep.subr.mxu0 0.0
    %1021 = vmatpush1.msra.mxu0 0.0
    %1022 = vmatprep.subr.mxu0 0.0
    %1023 = vmatpush1.msra.mxu0 0.0
    %1024 = vmatprep.subr.mxu0 0.0
    %1025 = vmatpush1.msra.mxu0 0.0
    %1026 = vmatprep.subr.mxu0 0.0
    %1027 = vmatpush1.msra.mxu0 0.0
    %1028 = vmatprep.subr.mxu0 0.0
    %1029 = vmatpush1.msra.mxu0 0.0
    %1030 = vmatprep.subr.mxu0 0.0
    %1031 = vmatpush1.msra.mxu0 0.0
    %1032 = vmatprep.subr.mxu0 0.0
    %1033 = vmatpush1.msra.mxu0 0.0
    %1034 = vmatprep.subr.mxu0 0.0
    %1035 = vmatpush1.msra.mxu0 %v924
    %1036 = vmatprep.subr.mxu0 0.0
    %1037 = vmatpush1.msra.mxu0 %v923
    %1038 = vmatprep.subr.mxu0 0.0
    %1039 = vmatpush1.msra.mxu0 %v922
    %1040 = vmatprep.subr.mxu0 0.0
    %1041 = vmatpush1.msra.mxu0 %v921
    %1042 = vmatprep.subr.mxu0 0.0
    %1043 = vmatpush2.msra.mxu0 0.0
    %1044 = vmatprep.subr.mxu0 0.0
    %1045 = vmatpush2.msra.mxu0 0.0
    %1046 = vmatprep.subr.mxu0 0.0
    %1047 = vmatpush2.msra.mxu0 0.0
    %1048 = vmatprep.subr.mxu0 0.0
    %1049 = vmatpush2.msra.mxu0 0.0
    %1050 = vmatprep.subr.mxu0 0.0
    %1051 = vmatpush2.msra.mxu0 0.0
    %1052 = vmatprep.subr.mxu0 0.0
    %1053 = vmatpush2.msra.mxu0 0.0
    %1054 = vmatprep.subr.mxu0 0.0
    %1055 = vmatpush2.msra.mxu0 0.0
    %1056 = vmatprep.subr.mxu0 0.0
    %1057 = vmatpush2.msra.mxu0 0.0
    %1058 = vmatprep.subr.mxu0 0.0
    %1059 = vmatpush2.msra.mxu0 0.0
    %1060 = vmatprep.subr.mxu0 0.0
    %1061 = vmatpush2.msra.mxu0 0.0
    %1062 = vmatprep.subr.mxu0 0.0
    %1063 = vmatpush2.msra.mxu0 0.0
    %1064 = vmatprep.subr.mxu0 0.0
    %1065 = vmatpush2.msra.mxu0 0.0
    %1066 = vmatprep.subr.mxu0 0.0
    %1067 = vmatpush2.msra.mxu0 0.0
    %1068 = vmatprep.subr.mxu0 0.0
    %1069 = vmatpush2.msra.mxu0 0.0
    %1070 = vmatprep.subr.mxu0 0.0
    %1071 = vmatpush2.msra.mxu0 0.0
    %1072 = vmatprep.subr.mxu0 0.0
    %1073 = vmatpush2.msra.mxu0 0.0
    %1074 = vmatprep.mubr.f32.mxu0 0.0
    %1075 = vmatmul.mubr.f32.gmra.mxu0 %v260
    %v1076 = vpop.f32.mrf.mxu0
    %v1077 = vadd.f32 %v1002, %v1076
    %v1078 = vpop.f32.mrf.mxu0
    %1079 = vmatprep.mubr.f32.mxu0 0.0
    %1080 = vmatmul.mubr.f32.gmra.mxu0 %v263
    %v1081 = vpop.f32.mrf.mxu0
    %v1082 = vadd.f32 %v1007, %v1081
    %v1083 = vpop.f32.mrf.mxu0
    %1084 = vdwg.mxu0
    %v1085 = vld [vmem:[%s17] sm:$0x1]
    %v1087 = vlaneseq
    %v1088 = vshrl.u32 %v1087, 7
    %v1089 = vsub.s32 0, %v1088
    %v1090 = vrot.slane %v1085, %v1089
    %v1092 = vadd.f32 %v1077, %v1090
    %v1093 = vadd.f32 %v1082, %v1090
    %v1094 = vmax.f32 %v1092, 0.0
    %v1095 = vmax.f32 %v1093, 0.0
    %v1096 = vld [vmem:[%s18] sm:$0xff]
    %v1097 = vld [vmem:[%s18 + $0x8] sm:$0xff]
    %v1098 = vld [vmem:[%s18 + $0x10] sm:$0xff]
    %v1099 = vld [vmem:[%s18 + $0x18] sm:$0xff]
    %v1100 = vld [vmem:[%s19] sm:$0x1]
    %v1102 = vlaneseq
    %v1103 = vshrl.u32 %v1102, 7
    %v1104 = vsub.s32 0, %v1103
    %v1105 = vrot.slane %v1100, %v1104
    %v1108 = vsel %vm258, %v1094, 0
    %v1111 = vsel %vm258, %v1095, 0
    %1113 = vmatprep.subr.mxu0 0.0
    %1114 = vmatpush1.msra.mxu0 0.0
    %1115 = vmatprep.subr.mxu0 0.0
    %1116 = vmatpush1.msra.mxu0 0.0
    %1117 = vmatprep.subr.mxu0 0.0
    %1118 = vmatpush1.msra.mxu0 0.0
    %1119 = vmatprep.subr.mxu0 0.0
    %1120 = vmatpush1.msra.mxu0 0.0
    %1121 = vmatprep.subr.mxu0 0.0
    %1122 = vmatpush1.msra.mxu0 0.0
    %1123 = vmatprep.subr.mxu0 0.0
    %1124 = vmatpush1.msra.mxu0 0.0
    %1125 = vmatprep.subr.mxu0 0.0
    %1126 = vmatpush1.msra.mxu0 0.0
    %1127 = vmatprep.subr.mxu0 0.0
    %1128 = vmatpush1.msra.mxu0 0.0
    %1129 = vmatprep.subr.mxu0 0.0
    %1130 = vmatpush1.msra.mxu0 0.0
    %1131 = vmatprep.subr.mxu0 0.0
    %1132 = vmatpush1.msra.mxu0 0.0
    %1133 = vmatprep.subr.mxu0 0.0
    %1134 = vmatpush1.msra.mxu0 0.0
    %1135 = vmatprep.subr.mxu0 0.0
    %1136 = vmatpush1.msra.mxu0 0.0
    %1137 = vmatprep.subr.mxu0 0.0
    %1138 = vmatpush1.msra.mxu0 %v1099
    %1139 = vmatprep.subr.mxu0 0.0
    %1140 = vmatpush1.msra.mxu0 %v1098
    %1141 = vmatprep.subr.mxu0 0.0
    %1142 = vmatpush1.msra.mxu0 %v1097
    %1143 = vmatprep.subr.mxu0 0.0
    %1144 = vmatpush1.msra.mxu0 %v1096
    %1145 = vmatprep.subr.mxu0 0.0
    %1146 = vmatpush2.msra.mxu0 0.0
    %1147 = vmatprep.subr.mxu0 0.0
    %1148 = vmatpush2.msra.mxu0 0.0
    %1149 = vmatprep.subr.mxu0 0.0
    %1150 = vmatpush2.msra.mxu0 0.0
    %1151 = vmatprep.subr.mxu0 0.0
    %1152 = vmatpush2.msra.mxu0 0.0
    %1153 = vmatprep.subr.mxu0 0.0
    %1154 = vmatpush2.msra.mxu0 0.0
    %1155 = vmatprep.subr.mxu0 0.0
    %1156 = vmatpush2.msra.mxu0 0.0
    %1157 = vmatprep.subr.mxu0 0.0
    %1158 = vmatpush2.msra.mxu0 0.0
    %1159 = vmatprep.subr.mxu0 0.0
    %1160 = vmatpush2.msra.mxu0 0.0
    %1161 = vmatprep.subr.mxu0 0.0
    %1162 = vmatpush2.msra.mxu0 0.0
    %1163 = vmatprep.subr.mxu0 0.0
    %1164 = vmatpush2.msra.mxu0 0.0
    %1165 = vmatprep.subr.mxu0 0.0
    %1166 = vmatpush2.msra.mxu0 0.0
    %1167 = vmatprep.subr.mxu0 0.0
    %1168 = vmatpush2.msra.mxu0 0.0
    %1169 = vmatprep.subr.mxu0 0.0
    %1170 = vmatpush2.msra.mxu0 0.0
    %1171 = vmatprep.subr.mxu0 0.0
    %1172 = vmatpush2.msra.mxu0 0.0
    %1173 = vmatprep.subr.mxu0 0.0
    %1174 = vmatpush2.msra.mxu0 0.0
    %1175 = vmatprep.subr.mxu0 0.0
    %1176 = vmatpush2.msra.mxu0 0.0
    %1177 = vmatprep.mubr.f32.mxu0 0.0
    %1178 = vmatmul.mubr.f32.gmra.mxu0 %v1108
    %v1179 = vpop.f32.mrf.mxu0
    %v1180 = vadd.f32 %v1105, %v1179
    %v1181 = vpop.f32.mrf.mxu0
    %1182 = vmatprep.mubr.f32.mxu0 0.0
    %1183 = vmatmul.mubr.f32.gmra.mxu0 %v1111
    %v1184 = vpop.f32.mrf.mxu0
    %v1185 = vadd.f32 %v1105, %v1184
    %v1186 = vpop.f32.mrf.mxu0
    %1187 = vdwg.mxu0
    %v1188 = vmax.f32 %v1180, 0.0
    %v1189 = vmax.f32 %v1185, 0.0
    %s1190 = scalar_lea.vmem %s9, 32
    %v1191 = vld [vmem:[%s1190] sm:$0xff]
    %v1192 = vld [vmem:[%s1190 + $0x8] sm:$0xff]
    %v1193 = vld [vmem:[%s1190 + $0x10] sm:$0xff]
    %v1194 = vld [vmem:[%s1190 + $0x18] sm:$0xff]
    %v1196 = vsel %vm258, %v1188, 0
    %v1199 = vsel %vm258, %v1189, 0
    %1201 = vmatprep.subr.mxu0 0.0
    %1202 = vmatpush1.msra.mxu0 0.0
    %1203 = vmatprep.subr.mxu0 0.0
    %1204 = vmatpush1.msra.mxu0 0.0
    %1205 = vmatprep.subr.mxu0 0.0
    %1206 = vmatpush1.msra.mxu0 0.0
    %1207 = vmatprep.subr.mxu0 0.0
    %1208 = vmatpush1.msra.mxu0 0.0
    %1209 = vmatprep.subr.mxu0 0.0
    %1210 = vmatpush1.msra.mxu0 0.0
    %1211 = vmatprep.subr.mxu0 0.0
    %1212 = vmatpush1.msra.mxu0 0.0
    %1213 = vmatprep.subr.mxu0 0.0
    %1214 = vmatpush1.msra.mxu0 0.0
    %1215 = vmatprep.subr.mxu0 0.0
    %1216 = vmatpush1.msra.mxu0 0.0
    %1217 = vmatprep.subr.mxu0 0.0
    %1218 = vmatpush1.msra.mxu0 0.0
    %1219 = vmatprep.subr.mxu0 0.0
    %1220 = vmatpush1.msra.mxu0 0.0
    %1221 = vmatprep.subr.mxu0 0.0
    %1222 = vmatpush1.msra.mxu0 0.0
    %1223 = vmatprep.subr.mxu0 0.0
    %1224 = vmatpush1.msra.mxu0 0.0
    %1225 = vmatprep.subr.mxu0 0.0
    %1226 = vmatpush1.msra.mxu0 %v1194
    %1227 = vmatprep.subr.mxu0 0.0
    %1228 = vmatpush1.msra.mxu0 %v1193
    %1229 = vmatprep.subr.mxu0 0.0
    %1230 = vmatpush1.msra.mxu0 %v1192
    %1231 = vmatprep.subr.mxu0 0.0
    %1232 = vmatpush1.msra.mxu0 %v1191
    %1233 = vmatprep.subr.mxu0 0.0
    %1234 = vmatpush2.msra.mxu0 0.0
    %1235 = vmatprep.subr.mxu0 0.0
    %1236 = vmatpush2.msra.mxu0 0.0
    %1237 = vmatprep.subr.mxu0 0.0
    %1238 = vmatpush2.msra.mxu0 0.0
    %1239 = vmatprep.subr.mxu0 0.0
    %1240 = vmatpush2.msra.mxu0 0.0
    %1241 = vmatprep.subr.mxu0 0.0
    %1242 = vmatpush2.msra.mxu0 0.0
    %1243 = vmatprep.subr.mxu0 0.0
    %1244 = vmatpush2.msra.mxu0 0.0
    %1245 = vmatprep.subr.mxu0 0.0
    %1246 = vmatpush2.msra.mxu0 0.0
    %1247 = vmatprep.subr.mxu0 0.0
    %1248 = vmatpush2.msra.mxu0 0.0
    %1249 = vmatprep.subr.mxu0 0.0
    %1250 = vmatpush2.msra.mxu0 0.0
    %1251 = vmatprep.subr.mxu0 0.0
    %1252 = vmatpush2.msra.mxu0 0.0
    %1253 = vmatprep.subr.mxu0 0.0
    %1254 = vmatpush2.msra.mxu0 0.0
    %1255 = vmatprep.subr.mxu0 0.0
    %1256 = vmatpush2.msra.mxu0 0.0
    %1257 = vmatprep.subr.mxu0 0.0
    %1258 = vmatpush2.msra.mxu0 0.0
    %1259 = vmatprep.subr.mxu0 0.0
    %1260 = vmatpush2.msra.mxu0 0.0
    %1261 = vmatprep.subr.mxu0 0.0
    %1262 = vmatpush2.msra.mxu0 0.0
    %1263 = vmatprep.subr.mxu0 0.0
    %1264 = vmatpush2.msra.mxu0 0.0
    %1265 = vmatprep.mubr.f32.mxu0 0.0
    %1266 = vmatmul.mubr.f32.gmra.mxu0 %v1196
    %v1267 = vpop.f32.mrf.mxu0
    %v1268 = vadd.f32 0.0, %v1267
    %v1269 = vpop.f32.mrf.mxu0
    %1270 = vmatprep.mubr.f32.mxu0 0.0
    %1271 = vmatmul.mubr.f32.gmra.mxu0 %v1199
    %v1272 = vpop.f32.mrf.mxu0
    %v1273 = vadd.f32 0.0, %v1272
    %v1274 = vpop.f32.mrf.mxu0
    %1275 = vdwg.mxu0
    %s1276 = scalar_lea.vmem %s10, 32
    %v1277 = vld [vmem:[%s1276] sm:$0xff]
    %v1278 = vld [vmem:[%s1276 + $0x8] sm:$0xff]
    %v1279 = vld [vmem:[%s1276 + $0x10] sm:$0xff]
    %v1280 = vld [vmem:[%s1276 + $0x18] sm:$0xff]
    %1281 = vmatprep.subr.mxu0 0.0
    %1282 = vmatpush1.msra.mxu0 0.0
    %1283 = vmatprep.subr.mxu0 0.0
    %1284 = vmatpush1.msra.mxu0 0.0
    %1285 = vmatprep.subr.mxu0 0.0
    %1286 = vmatpush1.msra.mxu0 0.0
    %1287 = vmatprep.subr.mxu0 0.0
    %1288 = vmatpush1.msra.mxu0 0.0
    %1289 = vmatprep.subr.mxu0 0.0
    %1290 = vmatpush1.msra.mxu0 0.0
    %1291 = vmatprep.subr.mxu0 0.0
    %1292 = vmatpush1.msra.mxu0 0.0
    %1293 = vmatprep.subr.mxu0 0.0
    %1294 = vmatpush1.msra.mxu0 0.0
    %1295 = vmatprep.subr.mxu0 0.0
    %1296 = vmatpush1.msra.mxu0 0.0
    %1297 = vmatprep.subr.mxu0 0.0
    %1298 = vmatpush1.msra.mxu0 0.0
    %1299 = vmatprep.subr.mxu0 0.0
    %1300 = vmatpush1.msra.mxu0 0.0
    %1301 = vmatprep.subr.mxu0 0.0
    %1302 = vmatpush1.msra.mxu0 0.0
    %1303 = vmatprep.subr.mxu0 0.0
    %1304 = vmatpush1.msra.mxu0 0.0
    %1305 = vmatprep.subr.mxu0 0.0
    %1306 = vmatpush1.msra.mxu0 %v1280
    %1307 = vmatprep.subr.mxu0 0.0
    %1308 = vmatpush1.msra.mxu0 %v1279
    %1309 = vmatprep.subr.mxu0 0.0
    %1310 = vmatpush1.msra.mxu0 %v1278
    %1311 = vmatprep.subr.mxu0 0.0
    %1312 = vmatpush1.msra.mxu0 %v1277
    %1313 = vmatprep.subr.mxu0 0.0
    %1314 = vmatpush2.msra.mxu0 0.0
    %1315 = vmatprep.subr.mxu0 0.0
    %1316 = vmatpush2.msra.mxu0 0.0
    %1317 = vmatprep.subr.mxu0 0.0
    %1318 = vmatpush2.msra.mxu0 0.0
    %1319 = vmatprep.subr.mxu0 0.0
    %1320 = vmatpush2.msra.mxu0 0.0
    %1321 = vmatprep.subr.mxu0 0.0
    %1322 = vmatpush2.msra.mxu0 0.0
    %1323 = vmatprep.subr.mxu0 0.0
    %1324 = vmatpush2.msra.mxu0 0.0
    %1325 = vmatprep.subr.mxu0 0.0
    %1326 = vmatpush2.msra.mxu0 0.0
    %1327 = vmatprep.subr.mxu0 0.0
    %1328 = vmatpush2.msra.mxu0 0.0
    %1329 = vmatprep.subr.mxu0 0.0
    %1330 = vmatpush2.msra.mxu0 0.0
    %1331 = vmatprep.subr.mxu0 0.0
    %1332 = vmatpush2.msra.mxu0 0.0
    %1333 = vmatprep.subr.mxu0 0.0
    %1334 = vmatpush2.msra.mxu0 0.0
    %1335 = vmatprep.subr.mxu0 0.0
    %1336 = vmatpush2.msra.mxu0 0.0
    %1337 = vmatprep.subr.mxu0 0.0
    %1338 = vmatpush2.msra.mxu0 0.0
    %1339 = vmatprep.subr.mxu0 0.0
    %1340 = vmatpush2.msra.mxu0 0.0
    %1341 = vmatprep.subr.mxu0 0.0
    %1342 = vmatpush2.msra.mxu0 0.0
    %1343 = vmatprep.subr.mxu0 0.0
    %1344 = vmatpush2.msra.mxu0 0.0
    %1345 = vmatprep.mubr.f32.mxu0 0.0
    %1346 = vmatmul.mubr.f32.gmra.mxu0 %v1196
    %v1347 = vpop.f32.mrf.mxu0
    %v1348 = vadd.f32 0.0, %v1347
    %v1349 = vpop.f32.mrf.mxu0
    %1350 = vmatprep.mubr.f32.mxu0 0.0
    %1351 = vmatmul.mubr.f32.gmra.mxu0 %v1199
    %v1352 = vpop.f32.mrf.mxu0
    %v1353 = vadd.f32 0.0, %v1352
    %v1354 = vpop.f32.mrf.mxu0
    %1355 = vdwg.mxu0
    %1356 = vmatprep.subr.mxu0 0.0
    %1357 = vmatpush1.msra.mxu0 0.0
    %1358 = vmatprep.subr.mxu0 0.0
    %1359 = vmatpush1.msra.mxu0 0.0
    %1360 = vmatprep.subr.mxu0 0.0
    %1361 = vmatpush1.msra.mxu0 0.0
    %1362 = vmatprep.subr.mxu0 0.0
    %1363 = vmatpush1.msra.mxu0 0.0
    %1364 = vmatprep.subr.mxu0 0.0
    %1365 = vmatpush1.msra.mxu0 0.0
    %1366 = vmatprep.subr.mxu0 0.0
    %1367 = vmatpush1.msra.mxu0 0.0
    %1368 = vmatprep.subr.mxu0 0.0
    %1369 = vmatpush1.msra.mxu0 0.0
    %1370 = vmatprep.subr.mxu0 0.0
    %1371 = vmatpush1.msra.mxu0 0.0
    %1372 = vmatprep.subr.mxu0 0.0
    %1373 = vmatpush1.msra.mxu0 0.0
    %1374 = vmatprep.subr.mxu0 0.0
    %1375 = vmatpush1.msra.mxu0 0.0
    %1376 = vmatprep.subr.mxu0 0.0
    %1377 = vmatpush1.msra.mxu0 0.0
    %1378 = vmatprep.subr.mxu0 0.0
    %1379 = vmatpush1.msra.mxu0 0.0
    %1380 = vmatprep.subr.mxu0 0.0
    %1381 = vmatpush1.msra.mxu0 0.0
    %1382 = vmatprep.subr.mxu0 0.0
    %1383 = vmatpush1.msra.mxu0 0.0
    %1384 = vmatprep.subr.mxu0 0.0
    %1385 = vmatpush1.msra.mxu0 %v1353
    %1386 = vmatprep.subr.mxu0 0.0
    %1387 = vmatpush1.msra.mxu0 %v1348
    %1388 = vmatprep.subr.mxu0 0.0
    %1389 = vmatpush2.msra.mxu0 0.0
    %1390 = vmatprep.subr.mxu0 0.0
    %1391 = vmatpush2.msra.mxu0 0.0
    %1392 = vmatprep.subr.mxu0 0.0
    %1393 = vmatpush2.msra.mxu0 0.0
    %1394 = vmatprep.subr.mxu0 0.0
    %1395 = vmatpush2.msra.mxu0 0.0
    %1396 = vmatprep.subr.mxu0 0.0
    %1397 = vmatpush2.msra.mxu0 0.0
    %1398 = vmatprep.subr.mxu0 0.0
    %1399 = vmatpush2.msra.mxu0 0.0
    %1400 = vmatprep.subr.mxu0 0.0
    %1401 = vmatpush2.msra.mxu0 0.0
    %1402 = vmatprep.subr.mxu0 0.0
    %1403 = vmatpush2.msra.mxu0 0.0
    %1404 = vmatprep.subr.mxu0 0.0
    %1405 = vmatpush2.msra.mxu0 0.0
    %1406 = vmatprep.subr.mxu0 0.0
    %1407 = vmatpush2.msra.mxu0 0.0
    %1408 = vmatprep.subr.mxu0 0.0
    %1409 = vmatpush2.msra.mxu0 0.0
    %1410 = vmatprep.subr.mxu0 0.0
    %1411 = vmatpush2.msra.mxu0 0.0
    %1412 = vmatprep.subr.mxu0 0.0
    %1413 = vmatpush2.msra.mxu0 0.0
    %1414 = vmatprep.subr.mxu0 0.0
    %1415 = vmatpush2.msra.mxu0 0.0
    %1416 = vmatprep.subr.mxu0 0.0
    %1417 = vmatpush2.msra.mxu0 0.0
    %1418 = vmatprep.subr.mxu0 0.0
    %1419 = vmatpush2.msra.mxu0 0.0
    %1420 = vmatprep.mubr.f32.mxu0 0.0
    %1421 = vmatmul.mubr.f32.gmra.mxu0 %v421
    %v1422 = vpop.f32.mrf.mxu0
    %v1423 = vadd.f32 0.0, %v1422
    %v1424 = vpop.f32.mrf.mxu0
    %1425 = vmatprep.mubr.f32.mxu0 0.0
    %1426 = vmatmul.mubr.f32.gmra.mxu0 %v424
    %v1427 = vpop.f32.mrf.mxu0
    %v1428 = vadd.f32 0.0, %v1427
    %v1429 = vpop.f32.mrf.mxu0
    %1430 = vmatprep.mubr.f32.mxu0 0.0
    %1431 = vmatmul.mubr.f32.gmra.mxu0 %v427
    %v1432 = vpop.f32.mrf.mxu0
    %v1433 = vadd.f32 0.0, %v1432
    %v1434 = vpop.f32.mrf.mxu0
    %1435 = vmatprep.mubr.f32.mxu0 0.0
    %1436 = vmatmul.mubr.f32.gmra.mxu0 %v430
    %v1437 = vpop.f32.mrf.mxu0
    %v1438 = vadd.f32 0.0, %v1437
    %v1439 = vpop.f32.mrf.mxu0
    %1440 = vdwg.mxu0
    %1441 = vmatprep.subr.mxu0 0.0
    %1442 = vmatpush1.msra.mxu0 0.0
    %1443 = vmatprep.subr.mxu0 0.0
    %1444 = vmatpush1.msra.mxu0 0.0
    %1445 = vmatprep.subr.mxu0 0.0
    %1446 = vmatpush1.msra.mxu0 0.0
    %1447 = vmatprep.subr.mxu0 0.0
    %1448 = vmatpush1.msra.mxu0 0.0
    %1449 = vmatprep.subr.mxu0 0.0
    %1450 = vmatpush1.msra.mxu0 0.0
    %1451 = vmatprep.subr.mxu0 0.0
    %1452 = vmatpush1.msra.mxu0 0.0
    %1453 = vmatprep.subr.mxu0 0.0
    %1454 = vmatpush1.msra.mxu0 0.0
    %1455 = vmatprep.subr.mxu0 0.0
    %1456 = vmatpush1.msra.mxu0 0.0
    %1457 = vmatprep.subr.mxu0 0.0
    %1458 = vmatpush1.msra.mxu0 0.0
    %1459 = vmatprep.subr.mxu0 0.0
    %1460 = vmatpush1.msra.mxu0 0.0
    %1461 = vmatprep.subr.mxu0 0.0
    %1462 = vmatpush1.msra.mxu0 0.0
    %1463 = vmatprep.subr.mxu0 0.0
    %1464 = vmatpush1.msra.mxu0 0.0
    %1465 = vmatprep.subr.mxu0 0.0
    %1466 = vmatpush1.msra.mxu0 0.0
    %1467 = vmatprep.subr.mxu0 0.0
    %1468 = vmatpush1.msra.mxu0 0.0
    %1469 = vmatprep.subr.mxu0 0.0
    %1470 = vmatpush1.msra.mxu0 %v1273
    %1471 = vmatprep.subr.mxu0 0.0
    %1472 = vmatpush1.msra.mxu0 %v1268
    %1473 = vmatprep.subr.mxu0 0.0
    %1474 = vmatpush2.msra.mxu0 0.0
    %1475 = vmatprep.subr.mxu0 0.0
    %1476 = vmatpush2.msra.mxu0 0.0
    %1477 = vmatprep.subr.mxu0 0.0
    %1478 = vmatpush2.msra.mxu0 0.0
    %1479 = vmatprep.subr.mxu0 0.0
    %1480 = vmatpush2.msra.mxu0 0.0
    %1481 = vmatprep.subr.mxu0 0.0
    %1482 = vmatpush2.msra.mxu0 0.0
    %1483 = vmatprep.subr.mxu0 0.0
    %1484 = vmatpush2.msra.mxu0 0.0
    %1485 = vmatprep.subr.mxu0 0.0
    %1486 = vmatpush2.msra.mxu0 0.0
    %1487 = vmatprep.subr.mxu0 0.0
    %1488 = vmatpush2.msra.mxu0 0.0
    %1489 = vmatprep.subr.mxu0 0.0
    %1490 = vmatpush2.msra.mxu0 0.0
    %1491 = vmatprep.subr.mxu0 0.0
    %1492 = vmatpush2.msra.mxu0 0.0
    %1493 = vmatprep.subr.mxu0 0.0
    %1494 = vmatpush2.msra.mxu0 0.0
    %1495 = vmatprep.subr.mxu0 0.0
    %1496 = vmatpush2.msra.mxu0 0.0
    %1497 = vmatprep.subr.mxu0 0.0
    %1498 = vmatpush2.msra.mxu0 0.0
    %1499 = vmatprep.subr.mxu0 0.0
    %1500 = vmatpush2.msra.mxu0 0.0
    %1501 = vmatprep.subr.mxu0 0.0
    %1502 = vmatpush2.msra.mxu0 0.0
    %1503 = vmatprep.subr.mxu0 0.0
    %1504 = vmatpush2.msra.mxu0 0.0
    %1505 = vmatprep.mubr.f32.mxu0 0.0
    %1506 = vmatmul.mubr.f32.gmra.mxu0 %v518
    %v1507 = vpop.f32.mrf.mxu0
    %v1508 = vadd.f32 %v1423, %v1507
    %v1509 = vpop.f32.mrf.mxu0
    %1510 = vmatprep.mubr.f32.mxu0 0.0
    %1511 = vmatmul.mubr.f32.gmra.mxu0 %v521
    %v1512 = vpop.f32.mrf.mxu0
    %v1513 = vadd.f32 %v1428, %v1512
    %v1514 = vpop.f32.mrf.mxu0
    %1515 = vmatprep.mubr.f32.mxu0 0.0
    %1516 = vmatmul.mubr.f32.gmra.mxu0 %v524
    %v1517 = vpop.f32.mrf.mxu0
    %v1518 = vadd.f32 %v1433, %v1517
    %v1519 = vpop.f32.mrf.mxu0
    %1520 = vmatprep.mubr.f32.mxu0 0.0
    %1521 = vmatmul.mubr.f32.gmra.mxu0 %v527
    %v1522 = vpop.f32.mrf.mxu0
    %v1523 = vadd.f32 %v1438, %v1522
    %v1524 = vpop.f32.mrf.mxu0
    %1525 = vdwg.mxu0
    %s1526 = scalar_lea.vmem %s11, 16
    %v1527 = vld [vmem:[%s1526] sm:$0xff]
    %v1528 = vld [vmem:[%s1526 + $0x8] sm:$0xff]
    %1529 = vmatprep.subr.mxu0 0.0
    %1530 = vmatpush1.msra.mxu0 0.0
    %1531 = vmatprep.subr.mxu0 0.0
    %1532 = vmatpush1.msra.mxu0 0.0
    %1533 = vmatprep.subr.mxu0 0.0
    %1534 = vmatpush1.msra.mxu0 0.0
    %1535 = vmatprep.subr.mxu0 0.0
    %1536 = vmatpush1.msra.mxu0 0.0
    %1537 = vmatprep.subr.mxu0 0.0
    %1538 = vmatpush1.msra.mxu0 0.0
    %1539 = vmatprep.subr.mxu0 0.0
    %1540 = vmatpush1.msra.mxu0 0.0
    %1541 = vmatprep.subr.mxu0 0.0
    %1542 = vmatpush1.msra.mxu0 0.0
    %1543 = vmatprep.subr.mxu0 0.0
    %1544 = vmatpush1.msra.mxu0 0.0
    %1545 = vmatprep.subr.mxu0 0.0
    %1546 = vmatpush1.msra.mxu0 0.0
    %1547 = vmatprep.subr.mxu0 0.0
    %1548 = vmatpush1.msra.mxu0 0.0
    %1549 = vmatprep.subr.mxu0 0.0
    %1550 = vmatpush1.msra.mxu0 0.0
    %1551 = vmatprep.subr.mxu0 0.0
    %1552 = vmatpush1.msra.mxu0 0.0
    %1553 = vmatprep.subr.mxu0 0.0
    %1554 = vmatpush1.msra.mxu0 0.0
    %1555 = vmatprep.subr.mxu0 0.0
    %1556 = vmatpush1.msra.mxu0 0.0
    %1557 = vmatprep.subr.mxu0 0.0
    %1558 = vmatpush1.msra.mxu0 %v1528
    %1559 = vmatprep.subr.mxu0 0.0
    %1560 = vmatpush1.msra.mxu0 %v1527
    %1561 = vmatprep.subr.mxu0 0.0
    %1562 = vmatpush2.msra.mxu0 0.0
    %1563 = vmatprep.subr.mxu0 0.0
    %1564 = vmatpush2.msra.mxu0 0.0
    %1565 = vmatprep.subr.mxu0 0.0
    %1566 = vmatpush2.msra.mxu0 0.0
    %1567 = vmatprep.subr.mxu0 0.0
    %1568 = vmatpush2.msra.mxu0 0.0
    %1569 = vmatprep.subr.mxu0 0.0
    %1570 = vmatpush2.msra.mxu0 0.0
    %1571 = vmatprep.subr.mxu0 0.0
    %1572 = vmatpush2.msra.mxu0 0.0
    %1573 = vmatprep.subr.mxu0 0.0
    %1574 = vmatpush2.msra.mxu0 0.0
    %1575 = vmatprep.subr.mxu0 0.0
    %1576 = vmatpush2.msra.mxu0 0.0
    %1577 = vmatprep.subr.mxu0 0.0
    %1578 = vmatpush2.msra.mxu0 0.0
    %1579 = vmatprep.subr.mxu0 0.0
    %1580 = vmatpush2.msra.mxu0 0.0
    %1581 = vmatprep.subr.mxu0 0.0
    %1582 = vmatpush2.msra.mxu0 0.0
    %1583 = vmatprep.subr.mxu0 0.0
    %1584 = vmatpush2.msra.mxu0 0.0
    %1585 = vmatprep.subr.mxu0 0.0
    %1586 = vmatpush2.msra.mxu0 0.0
    %1587 = vmatprep.subr.mxu0 0.0
    %1588 = vmatpush2.msra.mxu0 0.0
    %1589 = vmatprep.subr.mxu0 0.0
    %1590 = vmatpush2.msra.mxu0 0.0
    %1591 = vmatprep.subr.mxu0 0.0
    %1592 = vmatpush2.msra.mxu0 0.0
    %1593 = vmatprep.mubr.f32.mxu0 0.0
    %1594 = vmatmul.mubr.f32.gmra.mxu0 %v617
    %v1595 = vpop.f32.mrf.mxu0
    %v1596 = vadd.f32 0.0, %v1595
    %v1597 = vpop.f32.mrf.mxu0
    %1598 = vmatprep.mubr.f32.mxu0 0.0
    %1599 = vmatmul.mubr.f32.gmra.mxu0 %v620
    %v1600 = vpop.f32.mrf.mxu0
    %v1601 = vadd.f32 0.0, %v1600
    %v1602 = vpop.f32.mrf.mxu0
    %1603 = vmatprep.mubr.f32.mxu0 0.0
    %1604 = vmatmul.mubr.f32.gmra.mxu0 %v623
    %v1605 = vpop.f32.mrf.mxu0
    %v1606 = vadd.f32 0.0, %v1605
    %v1607 = vpop.f32.mrf.mxu0
    %1608 = vmatprep.mubr.f32.mxu0 0.0
    %1609 = vmatmul.mubr.f32.gmra.mxu0 %v626
    %v1610 = vpop.f32.mrf.mxu0
    %v1611 = vadd.f32 0.0, %v1610
    %v1612 = vpop.f32.mrf.mxu0
    %1613 = vdwg.mxu0
    %v1614 = vadd.f32 %v1508, %v1596
    %v1615 = vadd.f32 %v1513, %v1601
    %v1616 = vadd.f32 %v1518, %v1606
    %v1617 = vadd.f32 %v1523, %v1611
    %s1618 = scalar_lea.vmem %s12, 1
    %v1619 = vld [vmem:[%s1618] sm:$0x1]
    %v1621 = vlaneseq
    %v1622 = vshrl.u32 %v1621, 7
    %v1623 = vsub.s32 0, %v1622
    %v1624 = vrot.slane %v1619, %v1623
    %v1626 = vadd.f32 %v1614, %v1624
    %v1627 = vadd.f32 %v1615, %v1624
    %v1628 = vadd.f32 %v1616, %v1624
    %v1629 = vadd.f32 %v1617, %v1624
    %v1630 = vmax.f32 %v1626, 0.0
    %v1631 = vmax.f32 %v1627, 0.0
    %v1632 = vmax.f32 %v1628, 0.0
    %v1633 = vmax.f32 %v1629, 0.0
    %s1634 = scalar_lea.vmem %s13, 32
    %v1635 = vld [vmem:[%s1634] sm:$0xff]
    %v1636 = vld [vmem:[%s1634 + $0x8] sm:$0xff]
    %v1637 = vld [vmem:[%s1634 + $0x10] sm:$0xff]
    %v1638 = vld [vmem:[%s1634 + $0x18] sm:$0xff]
    %s1639 = scalar_lea.vmem %s14, 1
    %v1640 = vld [vmem:[%s1639] sm:$0x1]
    %v1642 = vlaneseq
    %v1643 = vshrl.u32 %v1642, 7
    %v1644 = vsub.s32 0, %v1643
    %v1645 = vrot.slane %v1640, %v1644
    %v1648 = vsel %vm258, %v1630, 0
    %v1651 = vsel %vm258, %v1631, 0
    %v1654 = vsel %vm258, %v1632, 0
    %v1657 = vsel %vm258, %v1633, 0
    %1659 = vmatprep.subr.mxu0 0.0
    %1660 = vmatpush1.msra.mxu0 0.0
    %1661 = vmatprep.subr.mxu0 0.0
    %1662 = vmatpush1.msra.mxu0 0.0
    %1663 = vmatprep.subr.mxu0 0.0
    %1664 = vmatpush1.msra.mxu0 0.0
    %1665 = vmatprep.subr.mxu0 0.0
    %1666 = vmatpush1.msra.mxu0 0.0
    %1667 = vmatprep.subr.mxu0 0.0
    %1668 = vmatpush1.msra.mxu0 0.0
    %1669 = vmatprep.subr.mxu0 0.0
    %1670 = vmatpush1.msra.mxu0 0.0
    %1671 = vmatprep.subr.mxu0 0.0
    %1672 = vmatpush1.msra.mxu0 0.0
    %1673 = vmatprep.subr.mxu0 0.0
    %1674 = vmatpush1.msra.mxu0 0.0
    %1675 = vmatprep.subr.mxu0 0.0
    %1676 = vmatpush1.msra.mxu0 0.0
    %1677 = vmatprep.subr.mxu0 0.0
    %1678 = vmatpush1.msra.mxu0 0.0
    %1679 = vmatprep.subr.mxu0 0.0
    %1680 = vmatpush1.msra.mxu0 0.0
    %1681 = vmatprep.subr.mxu0 0.0
    %1682 = vmatpush1.msra.mxu0 0.0
    %1683 = vmatprep.subr.mxu0 0.0
    %1684 = vmatpush1.msra.mxu0 %v1638
    %1685 = vmatprep.subr.mxu0 0.0
    %1686 = vmatpush1.msra.mxu0 %v1637
    %1687 = vmatprep.subr.mxu0 0.0
    %1688 = vmatpush1.msra.mxu0 %v1636
    %1689 = vmatprep.subr.mxu0 0.0
    %1690 = vmatpush1.msra.mxu0 %v1635
    %1691 = vmatprep.subr.mxu0 0.0
    %1692 = vmatpush2.msra.mxu0 0.0
    %1693 = vmatprep.subr.mxu0 0.0
    %1694 = vmatpush2.msra.mxu0 0.0
    %1695 = vmatprep.subr.mxu0 0.0
    %1696 = vmatpush2.msra.mxu0 0.0
    %1697 = vmatprep.subr.mxu0 0.0
    %1698 = vmatpush2.msra.mxu0 0.0
    %1699 = vmatprep.subr.mxu0 0.0
    %1700 = vmatpush2.msra.mxu0 0.0
    %1701 = vmatprep.subr.mxu0 0.0
    %1702 = vmatpush2.msra.mxu0 0.0
    %1703 = vmatprep.subr.mxu0 0.0
    %1704 = vmatpush2.msra.mxu0 0.0
    %1705 = vmatprep.subr.mxu0 0.0
    %1706 = vmatpush2.msra.mxu0 0.0
    %1707 = vmatprep.subr.mxu0 0.0
    %1708 = vmatpush2.msra.mxu0 0.0
    %1709 = vmatprep.subr.mxu0 0.0
    %1710 = vmatpush2.msra.mxu0 0.0
    %1711 = vmatprep.subr.mxu0 0.0
    %1712 = vmatpush2.msra.mxu0 0.0
    %1713 = vmatprep.subr.mxu0 0.0
    %1714 = vmatpush2.msra.mxu0 0.0
    %1715 = vmatprep.subr.mxu0 0.0
    %1716 = vmatpush2.msra.mxu0 0.0
    %1717 = vmatprep.subr.mxu0 0.0
    %1718 = vmatpush2.msra.mxu0 0.0
    %1719 = vmatprep.subr.mxu0 0.0
    %1720 = vmatpush2.msra.mxu0 0.0
    %1721 = vmatprep.subr.mxu0 0.0
    %1722 = vmatpush2.msra.mxu0 0.0
    %1723 = vmatprep.mubr.f32.mxu0 0.0
    %1724 = vmatmul.mubr.f32.gmra.mxu0 %v1648
    %v1725 = vpop.f32.mrf.mxu0
    %v1726 = vadd.f32 %v1645, %v1725
    %v1727 = vpop.f32.mrf.mxu0
    %1728 = vmatprep.mubr.f32.mxu0 0.0
    %1729 = vmatmul.mubr.f32.gmra.mxu0 %v1651
    %v1730 = vpop.f32.mrf.mxu0
    %v1731 = vadd.f32 %v1645, %v1730
    %v1732 = vpop.f32.mrf.mxu0
    %1733 = vmatprep.mubr.f32.mxu0 0.0
    %1734 = vmatmul.mubr.f32.gmra.mxu0 %v1654
    %v1735 = vpop.f32.mrf.mxu0
    %v1736 = vadd.f32 %v1645, %v1735
    %v1737 = vpop.f32.mrf.mxu0
    %1738 = vmatprep.mubr.f32.mxu0 0.0
    %1739 = vmatmul.mubr.f32.gmra.mxu0 %v1657
    %v1740 = vpop.f32.mrf.mxu0
    %v1741 = vadd.f32 %v1645, %v1740
    %v1742 = vpop.f32.mrf.mxu0
    %1743 = vdwg.mxu0
    %1744 = vmatprep.subr.mxu0 0.0
    %1745 = vmatpush1.msra.mxu0 0.0
    %1746 = vmatprep.subr.mxu0 0.0
    %1747 = vmatpush1.msra.mxu0 0.0
    %1748 = vmatprep.subr.mxu0 0.0
    %1749 = vmatpush1.msra.mxu0 0.0
    %1750 = vmatprep.subr.mxu0 0.0
    %1751 = vmatpush1.msra.mxu0 0.0
    %1752 = vmatprep.subr.mxu0 0.0
    %1753 = vmatpush1.msra.mxu0 0.0
    %1754 = vmatprep.subr.mxu0 0.0
    %1755 = vmatpush1.msra.mxu0 0.0
    %1756 = vmatprep.subr.mxu0 0.0
    %1757 = vmatpush1.msra.mxu0 0.0
    %1758 = vmatprep.subr.mxu0 0.0
    %1759 = vmatpush1.msra.mxu0 0.0
    %1760 = vmatprep.subr.mxu0 0.0
    %1761 = vmatpush1.msra.mxu0 0.0
    %1762 = vmatprep.subr.mxu0 0.0
    %1763 = vmatpush1.msra.mxu0 0.0
    %1764 = vmatprep.subr.mxu0 0.0
    %1765 = vmatpush1.msra.mxu0 0.0
    %1766 = vmatprep.subr.mxu0 0.0
    %1767 = vmatpush1.msra.mxu0 0.0
    %1768 = vmatprep.subr.mxu0 0.0
    %1769 = vmatpush1.msra.mxu0 %v1741
    %1770 = vmatprep.subr.mxu0 0.0
    %1771 = vmatpush1.msra.mxu0 %v1736
    %1772 = vmatprep.subr.mxu0 0.0
    %1773 = vmatpush1.msra.mxu0 %v1731
    %1774 = vmatprep.subr.mxu0 0.0
    %1775 = vmatpush1.msra.mxu0 %v1726
    %1776 = vmatprep.subr.mxu0 0.0
    %1777 = vmatpush2.msra.mxu0 0.0
    %1778 = vmatprep.subr.mxu0 0.0
    %1779 = vmatpush2.msra.mxu0 0.0
    %1780 = vmatprep.subr.mxu0 0.0
    %1781 = vmatpush2.msra.mxu0 0.0
    %1782 = vmatprep.subr.mxu0 0.0
    %1783 = vmatpush2.msra.mxu0 0.0
    %1784 = vmatprep.subr.mxu0 0.0
    %1785 = vmatpush2.msra.mxu0 0.0
    %1786 = vmatprep.subr.mxu0 0.0
    %1787 = vmatpush2.msra.mxu0 0.0
    %1788 = vmatprep.subr.mxu0 0.0
    %1789 = vmatpush2.msra.mxu0 0.0
    %1790 = vmatprep.subr.mxu0 0.0
    %1791 = vmatpush2.msra.mxu0 0.0
    %1792 = vmatprep.subr.mxu0 0.0
    %1793 = vmatpush2.msra.mxu0 0.0
    %1794 = vmatprep.subr.mxu0 0.0
    %1795 = vmatpush2.msra.mxu0 0.0
    %1796 = vmatprep.subr.mxu0 0.0
    %1797 = vmatpush2.msra.mxu0 0.0
    %1798 = vmatprep.subr.mxu0 0.0
    %1799 = vmatpush2.msra.mxu0 0.0
    %1800 = vmatprep.subr.mxu0 0.0
    %1801 = vmatpush2.msra.mxu0 0.0
    %1802 = vmatprep.subr.mxu0 0.0
    %1803 = vmatpush2.msra.mxu0 0.0
    %1804 = vmatprep.subr.mxu0 0.0
    %1805 = vmatpush2.msra.mxu0 0.0
    %1806 = vmatprep.subr.mxu0 0.0
    %1807 = vmatpush2.msra.mxu0 0.0
    %1808 = vmatprep.mubr.f32.mxu0 0.0
    %1809 = vmatmul.mubr.f32.gmra.mxu0 %v841
    %v1810 = vpop.f32.mrf.mxu0
    %v1811 = vadd.f32 0.0, %v1810
    %v1812 = vpop.f32.mrf.mxu0
    %1813 = vmatprep.mubr.f32.mxu0 0.0
    %1814 = vmatmul.mubr.f32.gmra.mxu0 %v844
    %v1815 = vpop.f32.mrf.mxu0
    %v1816 = vadd.f32 0.0, %v1815
    %v1817 = vpop.f32.mrf.mxu0
    %1818 = vdwg.mxu0
    %s1819 = scalar_lea.vmem %s15, 32
    %v1820 = vld [vmem:[%s1819] sm:$0xff]
    %v1821 = vld [vmem:[%s1819 + $0x8] sm:$0xff]
    %v1822 = vld [vmem:[%s1819 + $0x10] sm:$0xff]
    %v1823 = vld [vmem:[%s1819 + $0x18] sm:$0xff]
    %s1824 = scalar_lea.vmem %s16, 32
    %v1825 = vld [vmem:[%s1824] sm:$0xff]
    %v1826 = vld [vmem:[%s1824 + $0x8] sm:$0xff]
    %v1827 = vld [vmem:[%s1824 + $0x10] sm:$0xff]
    %v1828 = vld [vmem:[%s1824 + $0x18] sm:$0xff]
    %v1830 = vsel %vm258, %v1811, 0
    %v1833 = vsel %vm258, %v1816, 0
    %1835 = vmatprep.subr.mxu0 0.0
    %1836 = vmatpush1.msra.mxu0 0.0
    %1837 = vmatprep.subr.mxu0 0.0
    %1838 = vmatpush1.msra.mxu0 0.0
    %1839 = vmatprep.subr.mxu0 0.0
    %1840 = vmatpush1.msra.mxu0 0.0
    %1841 = vmatprep.subr.mxu0 0.0
    %1842 = vmatpush1.msra.mxu0 0.0
    %1843 = vmatprep.subr.mxu0 0.0
    %1844 = vmatpush1.msra.mxu0 0.0
    %1845 = vmatprep.subr.mxu0 0.0
    %1846 = vmatpush1.msra.mxu0 0.0
    %1847 = vmatprep.subr.mxu0 0.0
    %1848 = vmatpush1.msra.mxu0 0.0
    %1849 = vmatprep.subr.mxu0 0.0
    %1850 = vmatpush1.msra.mxu0 0.0
    %1851 = vmatprep.subr.mxu0 0.0
    %1852 = vmatpush1.msra.mxu0 0.0
    %1853 = vmatprep.subr.mxu0 0.0
    %1854 = vmatpush1.msra.mxu0 0.0
    %1855 = vmatprep.subr.mxu0 0.0
    %1856 = vmatpush1.msra.mxu0 0.0
    %1857 = vmatprep.subr.mxu0 0.0
    %1858 = vmatpush1.msra.mxu0 0.0
    %1859 = vmatprep.subr.mxu0 0.0
    %1860 = vmatpush1.msra.mxu0 %v1828
    %1861 = vmatprep.subr.mxu0 0.0
    %1862 = vmatpush1.msra.mxu0 %v1827
    %1863 = vmatprep.subr.mxu0 0.0
    %1864 = vmatpush1.msra.mxu0 %v1826
    %1865 = vmatprep.subr.mxu0 0.0
    %1866 = vmatpush1.msra.mxu0 %v1825
    %1867 = vmatprep.subr.mxu0 0.0
    %1868 = vmatpush2.msra.mxu0 0.0
    %1869 = vmatprep.subr.mxu0 0.0
    %1870 = vmatpush2.msra.mxu0 0.0
    %1871 = vmatprep.subr.mxu0 0.0
    %1872 = vmatpush2.msra.mxu0 0.0
    %1873 = vmatprep.subr.mxu0 0.0
    %1874 = vmatpush2.msra.mxu0 0.0
    %1875 = vmatprep.subr.mxu0 0.0
    %1876 = vmatpush2.msra.mxu0 0.0
    %1877 = vmatprep.subr.mxu0 0.0
    %1878 = vmatpush2.msra.mxu0 0.0
    %1879 = vmatprep.subr.mxu0 0.0
    %1880 = vmatpush2.msra.mxu0 0.0
    %1881 = vmatprep.subr.mxu0 0.0
    %1882 = vmatpush2.msra.mxu0 0.0
    %1883 = vmatprep.subr.mxu0 0.0
    %1884 = vmatpush2.msra.mxu0 0.0
    %1885 = vmatprep.subr.mxu0 0.0
    %1886 = vmatpush2.msra.mxu0 0.0
    %1887 = vmatprep.subr.mxu0 0.0
    %1888 = vmatpush2.msra.mxu0 0.0
    %1889 = vmatprep.subr.mxu0 0.0
    %1890 = vmatpush2.msra.mxu0 0.0
    %1891 = vmatprep.subr.mxu0 0.0
    %1892 = vmatpush2.msra.mxu0 0.0
    %1893 = vmatprep.subr.mxu0 0.0
    %1894 = vmatpush2.msra.mxu0 0.0
    %1895 = vmatprep.subr.mxu0 0.0
    %1896 = vmatpush2.msra.mxu0 0.0
    %1897 = vmatprep.subr.mxu0 0.0
    %1898 = vmatpush2.msra.mxu0 0.0
    %1899 = vmatprep.mubr.f32.mxu0 0.0
    %1900 = vmatmul.mubr.f32.gmra.mxu0 %v1830
    %v1901 = vpop.f32.mrf.mxu0
    %v1902 = vadd.f32 0.0, %v1901
    %v1903 = vpop.f32.mrf.mxu0
    %1904 = vmatprep.mubr.f32.mxu0 0.0
    %1905 = vmatmul.mubr.f32.gmra.mxu0 %v1833
    %v1906 = vpop.f32.mrf.mxu0
    %v1907 = vadd.f32 0.0, %v1906
    %v1908 = vpop.f32.mrf.mxu0
    %1909 = vdwg.mxu0
    %1910 = vmatprep.subr.mxu0 0.0
    %1911 = vmatpush1.msra.mxu0 0.0
    %1912 = vmatprep.subr.mxu0 0.0
    %1913 = vmatpush1.msra.mxu0 0.0
    %1914 = vmatprep.subr.mxu0 0.0
    %1915 = vmatpush1.msra.mxu0 0.0
    %1916 = vmatprep.subr.mxu0 0.0
    %1917 = vmatpush1.msra.mxu0 0.0
    %1918 = vmatprep.subr.mxu0 0.0
    %1919 = vmatpush1.msra.mxu0 0.0
    %1920 = vmatprep.subr.mxu0 0.0
    %1921 = vmatpush1.msra.mxu0 0.0
    %1922 = vmatprep.subr.mxu0 0.0
    %1923 = vmatpush1.msra.mxu0 0.0
    %1924 = vmatprep.subr.mxu0 0.0
    %1925 = vmatpush1.msra.mxu0 0.0
    %1926 = vmatprep.subr.mxu0 0.0
    %1927 = vmatpush1.msra.mxu0 0.0
    %1928 = vmatprep.subr.mxu0 0.0
    %1929 = vmatpush1.msra.mxu0 0.0
    %1930 = vmatprep.subr.mxu0 0.0
    %1931 = vmatpush1.msra.mxu0 0.0
    %1932 = vmatprep.subr.mxu0 0.0
    %1933 = vmatpush1.msra.mxu0 0.0
    %1934 = vmatprep.subr.mxu0 0.0
    %1935 = vmatpush1.msra.mxu0 %v1823
    %1936 = vmatprep.subr.mxu0 0.0
    %1937 = vmatpush1.msra.mxu0 %v1822
    %1938 = vmatprep.subr.mxu0 0.0
    %1939 = vmatpush1.msra.mxu0 %v1821
    %1940 = vmatprep.subr.mxu0 0.0
    %1941 = vmatpush1.msra.mxu0 %v1820
    %1942 = vmatprep.subr.mxu0 0.0
    %1943 = vmatpush2.msra.mxu0 0.0
    %1944 = vmatprep.subr.mxu0 0.0
    %1945 = vmatpush2.msra.mxu0 0.0
    %1946 = vmatprep.subr.mxu0 0.0
    %1947 = vmatpush2.msra.mxu0 0.0
    %1948 = vmatprep.subr.mxu0 0.0
    %1949 = vmatpush2.msra.mxu0 0.0
    %1950 = vmatprep.subr.mxu0 0.0
    %1951 = vmatpush2.msra.mxu0 0.0
    %1952 = vmatprep.subr.mxu0 0.0
    %1953 = vmatpush2.msra.mxu0 0.0
    %1954 = vmatprep.subr.mxu0 0.0
    %1955 = vmatpush2.msra.mxu0 0.0
    %1956 = vmatprep.subr.mxu0 0.0
    %1957 = vmatpush2.msra.mxu0 0.0
    %1958 = vmatprep.subr.mxu0 0.0
    %1959 = vmatpush2.msra.mxu0 0.0
    %1960 = vmatprep.subr.mxu0 0.0
    %1961 = vmatpush2.msra.mxu0 0.0
    %1962 = vmatprep.subr.mxu0 0.0
    %1963 = vmatpush2.msra.mxu0 0.0
    %1964 = vmatprep.subr.mxu0 0.0
    %1965 = vmatpush2.msra.mxu0 0.0
    %1966 = vmatprep.subr.mxu0 0.0
    %1967 = vmatpush2.msra.mxu0 0.0
    %1968 = vmatprep.subr.mxu0 0.0
    %1969 = vmatpush2.msra.mxu0 0.0
    %1970 = vmatprep.subr.mxu0 0.0
    %1971 = vmatpush2.msra.mxu0 0.0
    %1972 = vmatprep.subr.mxu0 0.0
    %1973 = vmatpush2.msra.mxu0 0.0
    %1974 = vmatprep.mubr.f32.mxu0 0.0
    %1975 = vmatmul.mubr.f32.gmra.mxu0 %v1196
    %v1976 = vpop.f32.mrf.mxu0
    %v1977 = vadd.f32 %v1902, %v1976
    %v1978 = vpop.f32.mrf.mxu0
    %1979 = vmatprep.mubr.f32.mxu0 0.0
    %1980 = vmatmul.mubr.f32.gmra.mxu0 %v1199
    %v1981 = vpop.f32.mrf.mxu0
    %v1982 = vadd.f32 %v1907, %v1981
    %v1983 = vpop.f32.mrf.mxu0
    %1984 = vdwg.mxu0
    %s1985 = scalar_lea.vmem %s17, 1
    %v1986 = vld [vmem:[%s1985] sm:$0x1]
    %v1988 = vlaneseq
    %v1989 = vshrl.u32 %v1988, 7
    %v1990 = vsub.s32 0, %v1989
    %v1991 = vrot.slane %v1986, %v1990
    %v1993 = vadd.f32 %v1977, %v1991
    %v1994 = vadd.f32 %v1982, %v1991
    %v1995 = vmax.f32 %v1993, 0.0
    %v1996 = vmax.f32 %v1994, 0.0
    %s1997 = scalar_lea.vmem %s18, 32
    %v1998 = vld [vmem:[%s1997] sm:$0xff]
    %v1999 = vld [vmem:[%s1997 + $0x8] sm:$0xff]
    %v2000 = vld [vmem:[%s1997 + $0x10] sm:$0xff]
    %v2001 = vld [vmem:[%s1997 + $0x18] sm:$0xff]
    %s2002 = scalar_lea.vmem %s19, 1
    %v2003 = vld [vmem:[%s2002] sm:$0x1]
    %v2005 = vlaneseq
    %v2006 = vshrl.u32 %v2005, 7
    %v2007 = vsub.s32 0, %v2006
    %v2008 = vrot.slane %v2003, %v2007
    %v2011 = vsel %vm258, %v1995, 0
    %v2014 = vsel %vm258, %v1996, 0
    %2016 = vmatprep.subr.mxu0 0.0
    %2017 = vmatpush1.msra.mxu0 0.0
    %2018 = vmatprep.subr.mxu0 0.0
    %2019 = vmatpush1.msra.mxu0 0.0
    %2020 = vmatprep.subr.mxu0 0.0
    %2021 = vmatpush1.msra.mxu0 0.0
    %2022 = vmatprep.subr.mxu0 0.0
    %2023 = vmatpush1.msra.mxu0 0.0
    %2024 = vmatprep.subr.mxu0 0.0
    %2025 = vmatpush1.msra.mxu0 0.0
    %2026 = vmatprep.subr.mxu0 0.0
    %2027 = vmatpush1.msra.mxu0 0.0
    %2028 = vmatprep.subr.mxu0 0.0
    %2029 = vmatpush1.msra.mxu0 0.0
    %2030 = vmatprep.subr.mxu0 0.0
    %2031 = vmatpush1.msra.mxu0 0.0
    %2032 = vmatprep.subr.mxu0 0.0
    %2033 = vmatpush1.msra.mxu0 0.0
    %2034 = vmatprep.subr.mxu0 0.0
    %2035 = vmatpush1.msra.mxu0 0.0
    %2036 = vmatprep.subr.mxu0 0.0
    %2037 = vmatpush1.msra.mxu0 0.0
    %2038 = vmatprep.subr.mxu0 0.0
    %2039 = vmatpush1.msra.mxu0 0.0
    %2040 = vmatprep.subr.mxu0 0.0
    %2041 = vmatpush1.msra.mxu0 %v2001
    %2042 = vmatprep.subr.mxu0 0.0
    %2043 = vmatpush1.msra.mxu0 %v2000
    %2044 = vmatprep.subr.mxu0 0.0
    %2045 = vmatpush1.msra.mxu0 %v1999
    %2046 = vmatprep.subr.mxu0 0.0
    %2047 = vmatpush1.msra.mxu0 %v1998
    %2048 = vmatprep.subr.mxu0 0.0
    %2049 = vmatpush2.msra.mxu0 0.0
    %2050 = vmatprep.subr.mxu0 0.0
    %2051 = vmatpush2.msra.mxu0 0.0
    %2052 = vmatprep.subr.mxu0 0.0
    %2053 = vmatpush2.msra.mxu0 0.0
    %2054 = vmatprep.subr.mxu0 0.0
    %2055 = vmatpush2.msra.mxu0 0.0
    %2056 = vmatprep.subr.mxu0 0.0
    %2057 = vmatpush2.msra.mxu0 0.0
    %2058 = vmatprep.subr.mxu0 0.0
    %2059 = vmatpush2.msra.mxu0 0.0
    %2060 = vmatprep.subr.mxu0 0.0
    %2061 = vmatpush2.msra.mxu0 0.0
    %2062 = vmatprep.subr.mxu0 0.0
    %2063 = vmatpush2.msra.mxu0 0.0
    %2064 = vmatprep.subr.mxu0 0.0
    %2065 = vmatpush2.msra.mxu0 0.0
    %2066 = vmatprep.subr.mxu0 0.0
    %2067 = vmatpush2.msra.mxu0 0.0
    %2068 = vmatprep.subr.mxu0 0.0
    %2069 = vmatpush2.msra.mxu0 0.0
    %2070 = vmatprep.subr.mxu0 0.0
    %2071 = vmatpush2.msra.mxu0 0.0
    %2072 = vmatprep.subr.mxu0 0.0
    %2073 = vmatpush2.msra.mxu0 0.0
    %2074 = vmatprep.subr.mxu0 0.0
    %2075 = vmatpush2.msra.mxu0 0.0
    %2076 = vmatprep.subr.mxu0 0.0
    %2077 = vmatpush2.msra.mxu0 0.0
    %2078 = vmatprep.subr.mxu0 0.0
    %2079 = vmatpush2.msra.mxu0 0.0
    %2080 = vmatprep.mubr.f32.mxu0 0.0
    %2081 = vmatmul.mubr.f32.gmra.mxu0 %v2011
    %v2082 = vpop.f32.mrf.mxu0
    %v2083 = vadd.f32 %v2008, %v2082
    %v2084 = vpop.f32.mrf.mxu0
    %2085 = vmatprep.mubr.f32.mxu0 0.0
    %2086 = vmatmul.mubr.f32.gmra.mxu0 %v2014
    %v2087 = vpop.f32.mrf.mxu0
    %v2088 = vadd.f32 %v2008, %v2087
    %v2089 = vpop.f32.mrf.mxu0
    %2090 = vdwg.mxu0
    %v2091 = vmax.f32 %v2083, 0.0
    %v2092 = vmax.f32 %v2088, 0.0
    %2093 = vst.msk [vmem:[#allocation4] sm:$0xff] %vm258, %v2091
    %2094 = vst.msk [vmem:[#allocation4 + $0x8] sm:$0xff] %vm258, %v2092
    %v2096 = vsel %vm419, %v161, 0
    %2098 = vmatprep.subr.mxu0 0.0
    %2099 = vmatpush1.msra.mxu0 0.0
    %2100 = vmatprep.subr.mxu0 0.0
    %2101 = vmatpush1.msra.mxu0 0.0
    %2102 = vmatprep.subr.mxu0 0.0
    %2103 = vmatpush1.msra.mxu0 0.0
    %2104 = vmatprep.subr.mxu0 0.0
    %2105 = vmatpush1.msra.mxu0 0.0
    %2106 = vmatprep.subr.mxu0 0.0
    %2107 = vmatpush1.msra.mxu0 0.0
    %2108 = vmatprep.subr.mxu0 0.0
    %2109 = vmatpush1.msra.mxu0 0.0
    %2110 = vmatprep.subr.mxu0 0.0
    %2111 = vmatpush1.msra.mxu0 0.0
    %2112 = vmatprep.subr.mxu0 0.0
    %2113 = vmatpush1.msra.mxu0 0.0
    %2114 = vmatprep.subr.mxu0 0.0
    %2115 = vmatpush1.msra.mxu0 0.0
    %2116 = vmatprep.subr.mxu0 0.0
    %2117 = vmatpush1.msra.mxu0 0.0
    %2118 = vmatprep.subr.mxu0 0.0
    %2119 = vmatpush1.msra.mxu0 0.0
    %2120 = vmatprep.subr.mxu0 0.0
    %2121 = vmatpush1.msra.mxu0 0.0
    %2122 = vmatprep.subr.mxu0 0.0
    %2123 = vmatpush1.msra.mxu0 0.0
    %2124 = vmatprep.subr.mxu0 0.0
    %2125 = vmatpush1.msra.mxu0 0.0
    %2126 = vmatprep.subr.mxu0 0.0
    %2127 = vmatpush1.msra.mxu0 %v2092
    %2128 = vmatprep.subr.mxu0 0.0
    %2129 = vmatpush1.msra.mxu0 %v2091
    %2130 = vmatprep.subr.mxu0 0.0
    %2131 = vmatpush2.msra.mxu0 0.0
    %2132 = vmatprep.subr.mxu0 0.0
    %2133 = vmatpush2.msra.mxu0 0.0
    %2134 = vmatprep.subr.mxu0 0.0
    %2135 = vmatpush2.msra.mxu0 0.0
    %2136 = vmatprep.subr.mxu0 0.0
    %2137 = vmatpush2.msra.mxu0 0.0
    %2138 = vmatprep.subr.mxu0 0.0
    %2139 = vmatpush2.msra.mxu0 0.0
    %2140 = vmatprep.subr.mxu0 0.0
    %2141 = vmatpush2.msra.mxu0 0.0
    %2142 = vmatprep.subr.mxu0 0.0
    %2143 = vmatpush2.msra.mxu0 0.0
    %2144 = vmatprep.subr.mxu0 0.0
    %2145 = vmatpush2.msra.mxu0 0.0
    %2146 = vmatprep.subr.mxu0 0.0
    %2147 = vmatpush2.msra.mxu0 0.0
    %2148 = vmatprep.subr.mxu0 0.0
    %2149 = vmatpush2.msra.mxu0 0.0
    %2150 = vmatprep.subr.mxu0 0.0
    %2151 = vmatpush2.msra.mxu0 0.0
    %2152 = vmatprep.subr.mxu0 0.0
    %2153 = vmatpush2.msra.mxu0 0.0
    %2154 = vmatprep.subr.mxu0 0.0
    %2155 = vmatpush2.msra.mxu0 0.0
    %2156 = vmatprep.subr.mxu0 0.0
    %2157 = vmatpush2.msra.mxu0 0.0
    %2158 = vmatprep.subr.mxu0 0.0
    %2159 = vmatpush2.msra.mxu0 0.0
    %2160 = vmatprep.subr.mxu0 0.0
    %2161 = vmatpush2.msra.mxu0 0.0
    %2162 = vmatprep.mubr.f32.mxu0 0.0
    %2163 = vmatmul.mubr.f32.gmra.mxu0 %v2096
    %v2164 = vpop.f32.mrf.mxu0
    %v2165 = vadd.f32 0.0, %v2164
    %v2166 = vpop.f32.mrf.mxu0
    %2167 = vdwg.mxu0
    %vm2168 = vcmask 254976
    %2169 = vst.msk [vmem:[#allocation2] sm:$0x3] %vm2168, %v2165
    // Predicated region
    $region82: #{gsn_forward.1} parent=1 // pred_check
      _
    $region83: #{gsn_forward.1} parent=1 // pred_check_branch
      %2171 = sbr.rel (0) target = $region85
    $region84: #{gsn_forward.1} parent=1 // pred_region
      %s2173 = ssub.s32 32, 32
      %2174 = vsyncadd [#allocation3], %s2173
      %s2176 = sshll.u32 [#allocation2], 4
      %s2177 = int_to_ptr.vmem [resolvable:$true] %s2176
      %2179 = dma.vmem_to_hbm [thread:$0]  %s2177, 32, %s20, [#allocation3]
    $region85: #{gsn_forward.1} parent=1 // pred_fallthru
      _
    // Predicated region
    $region86: #{gsn_forward.1} parent=1 // pred_check
      _
    $region87: #{gsn_forward.1} parent=1 // pred_check_branch
      %2181 = sbr.rel (0) target = $region89
    $region88: #{gsn_forward.1} parent=1 // pred_region
      %s2183 = ssub.s32 256, 256
      %2184 = vsyncadd [#allocation5], %s2183
      %s2185 = sshll.u32 [#allocation4], 4
      %s2186 = int_to_ptr.vmem [resolvable:$true] %s2185
      %2191 = dma.vmem_to_hbm [thread:$0]  %s2186, 256, %s21, [#allocation5], 128, 128, 8
    $region89: #{gsn_forward.1} parent=1 // pred_fallthru
      _
    // Predicated region
    $region90: #{gsn_forward.1} parent=1 // pred_check
      _
    $region91: #{gsn_forward.1} parent=1 // pred_check_branch
      %2193 = sbr.rel (0) target = $region93
    $region92: #{gsn_forward.1} parent=1 // pred_region
      %2194 = dma.done [#allocation3], 32
    $region93: #{gsn_forward.1} parent=1 // pred_fallthru
      _
    // Predicated region
    $region94: #{gsn_forward.1} parent=1 // pred_check
      _
    $region95: #{gsn_forward.1} parent=1 // pred_check_branch
      %2196 = sbr.rel (0) target = $region97
    $region96: #{gsn_forward.1} parent=1 // pred_region
      %2197 = dma.done [#allocation5], 256
    $region97: #{gsn_forward.1} parent=1 // pred_fallthru
      _
    %2198 = vsyncpa [#allocation3], 1
    %2199 = vsyncpa [#allocation5], 1

</llo_original>
